<compile_context>
chip_gen: v7x
topology: tpu7x:2x2x1
jax: 0.10.0
libtpu: 0.0.40
codegen_flags: <defaults>
</compile_context>

<pallas_src>
import math
import jax
import jax.numpy as jnp
from jax.experimental import pallas as pl
from jax.experimental.pallas import tpu as pltpu


# ---------------------------------------------------------------------------
# Pallas kernel: GRU recurrence + additive attention (online softmax) + proj
# ---------------------------------------------------------------------------
def gru_attn_kernel(x_ref, mask_ref,
                    wi_ref, bi_ref, wh_ref, bhn_ref,
                    wenc_ref, wq_ref, batt_ref, v_ref,
                    wp_ref, bp_ref,
                    out_ref,
                    xw_ref, outs_ref, wm_ref):
    S, _ = x_ref.shape                 # S = T * tb, rows ordered t-major
    tb = out_ref.shape[0]
    T = S // tb
    H = wh_ref.shape[0]

    f32 = jnp.float32
    bf16 = jnp.bfloat16
    NEG = jnp.float32(-1e30)           # scores stay f32; large-negative mask value

    def mm(a, b):
        return jnp.dot(a, b, preferred_element_type=f32)

    # ---- hoisted input-path GRU matmul: ONE big MXU op -> VMEM scratch ------
    # bi_ref already holds [bi_r+bh_r | bi_z+bh_z | bi_n] (folded in wrapper).
    xw_ref[...] = mm(x_ref[...], wi_ref[...]) + bi_ref[...]      # (S, 3H) f32

    wh = wh_ref[...]                    # (H, 3H) bf16, fused [r|z|n]
    bhn = bhn_ref[...]                  # (1, H)  f32

    # ---- masked GRU recurrence: one fused (tb,H)x(H,3H) gate matmul / step --
    # TODO(synk): gate lane blocks could be padded to 128-lane boundaries to
    #             avoid sub-vreg r/z/n slices while H=32 (skipped: marginal).
    def gru_step(t, h):
        off = pl.multiple_of(t * tb, tb)
        sl = pl.ds(off, tb)
        xt = xw_ref[sl, :]                                       # (tb, 3H) f32
        vt = 1.0 - mask_ref[sl, :]                               # (tb, 1) valid
        g = mm(h.astype(bf16), wh)                               # (tb, 3H) f32
        r = jax.nn.sigmoid(xt[:, 0:H] + g[:, 0:H])
        z = jax.nn.sigmoid(xt[:, H:2 * H] + g[:, H:2 * H])
        n = jnp.tanh(xt[:, 2 * H:] + r * (g[:, 2 * H:] + bhn))
        h_new = (1.0 - z) * n + z * h
        out_t = vt * h_new                                       # zero at PAD
        outs_ref[sl, :] = out_t
        return out_t + (1.0 - vt) * h                            # hold at PAD

    h = jax.lax.fori_loop(0, T, gru_step,
                          jnp.zeros((tb, H), f32), unroll=True)

    # ---- additive attention (query = final hidden state) --------------------
    q_proj = mm(h.astype(bf16), wq_ref[...]) + batt_ref[...]     # (tb, H) f32
    # One stacked (S,H)x(H,H) enc-projection matmul -> scratch (read per step).
    wm_ref[...] = mm(outs_ref[...].astype(bf16), wenc_ref[...])  # (S, H) f32

    v = v_ref[...]                                               # (1, H) f32

    # Online (flash-style) softmax + weighted sum: single pass, no e/p arrays.
    def att_step(t, carry):
        m, denom, acc = carry
        off = pl.multiple_of(t * tb, tb)
        sl = pl.ds(off, tb)
        act = jnp.tanh(wm_ref[sl, :] + q_proj)                   # (tb, H)
        e = jnp.sum(act * v, axis=-1, keepdims=True)             # (tb, 1)
        e = jnp.where(mask_ref[sl, :] > 0.5, NEG, e)             # mask PADs
        m_new = jnp.maximum(m, e)
        alpha = jnp.exp(m - m_new)
        p = jnp.exp(e - m_new)
        o_t = outs_ref[sl, :]                                    # (tb, H) f32
        return m_new, alpha * denom + p, alpha * acc + p * o_t

    m0 = jnp.full((tb, 1), NEG, f32)
    d0 = jnp.zeros((tb, 1), f32)
    a0 = jnp.zeros((tb, H), f32)
    _, denom, acc = jax.lax.fori_loop(0, T, att_step, (m0, d0, a0), unroll=True)

    inv = pl.reciprocal(jnp.maximum(denom, 1e-30), approx=True)  # EUP; all-PAD guard
    avg = acc * inv                                              # (tb, H) f32

    # dropout: identity in eval mode.
    # Projection: wp/bp are lane-padded to 128 -> unmasked store / HBM writeback.
    out_ref[...] = mm(avg.astype(bf16), wp_ref[...]) + bp_ref[...]   # (tb, OP)


# ---------------------------------------------------------------------------
# Wrapper
# ---------------------------------------------------------------------------
_VMEM_BUDGET_BYTES = 40 * 1024 * 1024     # conservative across v5e/v6e/v7x


def _tile_vmem_bytes(T, tb, E, H, OP):
    S = T * tb
    return (2 * S * E * 2            # x tile (bf16, double-buffered)
            + 2 * S * 4              # mask tile (f32, double-buffered)
            + S * 3 * H * 4          # xw scratch
            + 2 * S * H * 4          # outs + wm scratches
            + 2 * tb * OP * 4)       # output tile (double-buffered)


def _pick_batch_block(B, T, E, H, OP):
    # Sublane-aligned divisors of B with nt >= 2 (pipeline overlap); largest
    # tile that fits the VMEM budget wins.
    cands = [c for c in range(8, B // 2 + 1, 8) if B % c == 0]
    if not cands:
        return B                       # fallback: single tile (small B only)
    fitting = [c for c in cands if _tile_vmem_bytes(T, c, E, H, OP) <= _VMEM_BUDGET_BYTES]
    return max(fitting) if fitting else min(cands)


def attn_classifier_forward(x_emb, pad_mask_f, params, *, batch_block=None):
    """x_emb: (T, B, E) embedded tokens; pad_mask_f: (T, B), 1.0 at PAD."""
    T, B, E = x_emb.shape
    H = params["wh"].shape[-1]
    O = params["wp"].shape[-1]
    OP = ((O + 127) // 128) * 128                  # lane-dense projection width

    tb = _pick_batch_block(B, T, E, H, OP) if batch_block is None else batch_block
    assert B % tb == 0, "batch tile must divide B"
    assert tb % 8 == 0 or tb == B, "batch tile must be sublane (8) aligned"
    nt = B // tb
    S = T * tb

    bf16 = jnp.bfloat16

    # ---- fuse / cast GRU + attention parameters (gate order [r | z | n]) ----
    wi_f = jnp.concatenate([params["wi"][0], params["wi"][1], params["wi"][2]],
                           axis=-1).astype(bf16)                       # (E, 3H)
    wh_f = jnp.concatenate([params["wh"][0], params["wh"][1], params["wh"][2]],
                           axis=-1).astype(bf16)                       # (H, 3H)
    bi_f = jnp.concatenate([params["bi"][0] + params["bh"][0],
                            params["bi"][1] + params["bh"][1],
                            params["bi"][2]], axis=-1)                 # (1, 3H) f32
    bh_n = params["bh"][2]                                             # (1, H)  f32
    wenc = params["wenc"].astype(bf16)
    wq = params["wq"].astype(bf16)
    batt = params["batt"]
    v_row = params["v"].reshape(1, H)
    wp_pad = jnp.zeros((H, OP), jnp.float32).at[:, :O].set(params["wp"]).astype(bf16)
    bp_pad = jnp.zeros((1, OP), jnp.float32).at[:, :O].set(params["bp"])

    # ---- activation re-layout: row = t*tb + b_local inside a contiguous batch
    # tile; 2-D slabs so every per-step slice is an aligned sublane slice -----
    x_t = (x_emb.reshape(T, nt, tb, E).transpose(1, 0, 2, 3)
           .reshape(nt * S, E).astype(bf16))
    m_t = pad_mask_f.reshape(T, nt, tb).transpose(1, 0, 2).reshape(nt * S, 1)

    full = lambda a: pl.BlockSpec(a.shape, lambda j: (0,) * a.ndim)    # resident weights

    vmem_limit = int(min(max(2 * _tile_vmem_bytes(T, tb, E, H, OP) + (8 << 20),
                             32 << 20), 64 << 20))

    # TODO(synk): pack the small weight/bias operands into one slab (fewer DMA
    #             descriptors / duplicated VMEM copies) once E/H grow.
    out = pl.pallas_call(
        gru_attn_kernel,
        out_shape=jax.ShapeDtypeStruct((nt * tb, OP), jnp.float32),
        grid_spec=pltpu.PrefetchScalarGridSpec(
            num_scalar_prefetch=0,
            grid=(nt,),
            in_specs=[
                pl.BlockSpec((S, E), lambda j: (j, 0)),    # x tile (double-buffered)
                pl.BlockSpec((S, 1), lambda j: (j, 0)),    # mask tile
                full(wi_f), full(bi_f), full(wh_f), full(bh_n),
                full(wenc), full(wq), full(batt), full(v_row),
                full(wp_pad), full(bp_pad),
            ],
            out_specs=pl.BlockSpec((tb, OP), lambda j: (j, 0)),
            scratch_shapes=[pltpu.VMEM((S, 3 * H), jnp.float32),   # xw
                            pltpu.VMEM((S, H), jnp.float32),       # per-step outputs
                            pltpu.VMEM((S, H), jnp.float32)],      # enc projections
        ),
        compiler_params=pltpu.CompilerParams(
            dimension_semantics=("parallel",),   # batch tiles are independent
            vmem_limit_bytes=vmem_limit,
        ),
    )(x_t, m_t, wi_f, bi_f, wh_f, bh_n, wenc, wq, batt, v_row, wp_pad, bp_pad)

    return out[:, :O]                                              # (B, O)


# ---------------------------------------------------------------------------
# Pure-JAX reference.  With matmul_dtype=float32 this is exactly the original
# module's math; with matmul_dtype=bfloat16 the matmul operands are rounded
# the same way the kernel rounds them (accumulation stays f32).
# ---------------------------------------------------------------------------
def reference_forward(x_emb, mask, p, *, matmul_dtype=jnp.float32):
    c = lambda a: a.astype(matmul_dtype).astype(jnp.float32)
    T, B, _ = x_emb.shape
    H = p["wh"].shape[-1]
    h = jnp.zeros((B, H), jnp.float32)
    outs = []
    for t in range(T):
        xt = c(x_emb[t])
        hb = c(h)
        valid = (1.0 - mask[t])[:, None]
        r = jax.nn.sigmoid(xt @ c(p["wi"][0]) + p["bi"][0] + hb @ c(p["wh"][0]) + p["bh"][0])
        z = jax.nn.sigmoid(xt @ c(p["wi"][1]) + p["bi"][1] + hb @ c(p["wh"][1]) + p["bh"][1])
        n = jnp.tanh(xt @ c(p["wi"][2]) + p["bi"][2] + r * (hb @ c(p["wh"][2]) + p["bh"][2]))
        h_new = (1.0 - z) * n + z * h
        h = valid * h_new + (1.0 - valid) * h
        outs.append(valid * h_new)
    outputs = jnp.stack(outs, 0)                                   # (T, B, H)
    q_proj = c(h) @ c(p["wq"]) + p["batt"]
    act = jnp.tanh(c(outputs) @ c(p["wenc"]) + q_proj[None])
    e = jnp.einsum("tbh,h->tb", act, p["v"][:, 0])
    e = jnp.where(mask > 0.5, -1e30, e)
    attn = jax.nn.softmax(e, axis=0)
    avg = jnp.sum(attn[:, :, None] * outputs, axis=0)
    return c(avg) @ c(p["wp"]) + p["bp"]


if __name__ == "__main__":
    # ---- small, deterministic config ---------------------------------------
    T, B = 8, 16           # seq len, batch (tb=8, nt=2 -> pipelined grid)
    VOCAB, E, H, O = 50, 16, 32, 4
    PAD_ID = 0
    EMB_MAX_NORM = 5.0

    key = jax.random.PRNGKey(0)
    keys = jax.random.split(key, 16)

    # token ids with trailing padding (variable lengths)
    lengths = jax.random.randint(keys[12], (B,), 1, T + 1, dtype=jnp.int32)
    ids = jax.random.randint(keys[0], (T, B), 1, VOCAB, dtype=jnp.int32)
    t_idx = jnp.arange(T, dtype=jnp.int32)[:, None]
    pad_mask = t_idx >= lengths[None, :]                           # (T, B) True at PAD
    ids = jnp.where(pad_mask, PAD_ID, ids)
    pad_mask_f = pad_mask.astype(jnp.float32)

    # ---- parameters (deterministic init, PyTorch-like shapes) --------------
    k = 1.0 / math.sqrt(H)
    u = lambda kk, shape: jax.random.uniform(kk, shape, jnp.float32, -k, k)
    emb_w = jax.random.normal(keys[1], (VOCAB, E), jnp.float32) * 0.5
    emb_w = emb_w.at[PAD_ID].set(0.0)                              # padding_idx = PAD_ID
    # emulate nn.Embedding max_norm renorm (glue, done in plain JAX)
    norms = jnp.linalg.norm(emb_w, axis=1, keepdims=True)
    emb_w = emb_w * jnp.minimum(1.0, EMB_MAX_NORM / jnp.maximum(norms, 1e-7))

    params = {
        "wi":   u(keys[2], (3, E, H)),      # GRU input weights  [r, z, n]
        "wh":   u(keys[3], (3, H, H)),      # GRU hidden weights [r, z, n]
        "bi":   u(keys[4], (3, 1, H)),
        "bh":   u(keys[5], (3, 1, H)),
        "wenc": u(keys[6], (H, H)),         # feedforward attention: enc proj
        "wq":   u(keys[7], (H, H)),         # feedforward attention: query proj
        "batt": u(keys[8], (1, H)),
        "v":    u(keys[9], (H, 1)),         # attention score vector
        "wp":   u(keys[10], (H, O)),        # final Linear(rnn_size, output_size)
        "bp":   u(keys[11], (1, O)),
    }

    # embedding lookup (gather) is glue, done in plain JAX
    x_emb = emb_w[ids]                                             # (T, B, E)

    logits = jax.block_until_ready(attn_classifier_forward(x_emb, pad_mask_f, params))

    ref_mixed = reference_forward(x_emb, pad_mask_f, params, matmul_dtype=jnp.bfloat16)
    ref_f32 = reference_forward(x_emb, pad_mask_f, params)

    assert logits.shape == (B, O)
    assert bool(jnp.all(jnp.isfinite(logits)))
    # Tight check vs. a reference with identically-rounded (bf16) matmul operands.
    assert bool(jnp.allclose(logits, ref_mixed, rtol=1e-2, atol=1e-2)), (logits, ref_mixed)
    # Fidelity check vs. the pure-f32 original-module math (bf16-operand tolerance).
    assert bool(jnp.allclose(logits, ref_f32, rtol=5e-2, atol=5e-2)), (logits, ref_f32)
    print("KERNEL_OK")
</pallas_src>

<mosaic_0001>
module attributes {stable_mosaic.version = 11 : i64} {
  func.func @gru_attn_kernel(%arg0: i32, %arg1: memref<64x16xbf16, #tpu.memory_space<vmem>>, %arg2: memref<64x1xf32, #tpu.memory_space<vmem>>, %arg3: memref<16x96xbf16, #tpu.memory_space<vmem>>, %arg4: memref<1x96xf32, #tpu.memory_space<vmem>>, %arg5: memref<32x96xbf16, #tpu.memory_space<vmem>>, %arg6: memref<1x32xf32, #tpu.memory_space<vmem>>, %arg7: memref<32x32xbf16, #tpu.memory_space<vmem>>, %arg8: memref<32x32xbf16, #tpu.memory_space<vmem>>, %arg9: memref<1x32xf32, #tpu.memory_space<vmem>>, %arg10: memref<1x32xf32, #tpu.memory_space<vmem>>, %arg11: memref<32x128xbf16, #tpu.memory_space<vmem>>, %arg12: memref<1x128xf32, #tpu.memory_space<vmem>>, %arg13: memref<8x128xf32, #tpu.memory_space<vmem>>, %arg14: memref<64x96xf32, #tpu.memory_space<vmem>>, %arg15: memref<64x32xf32, #tpu.memory_space<vmem>>, %arg16: memref<64x32xf32, #tpu.memory_space<vmem>>) attributes {dimension_semantics = [#tpu.dimension_semantics<parallel>], iteration_bounds = array<i64: 2>, scalar_prefetch = 0 : i64, scratch_operands = 3 : i64, tpu.core_type = #tpu.core_type<tc>, window_params = [{transform_indices = @transform_0, window_bounds = array<i64: 64, 16>}, {transform_indices = @transform_1, window_bounds = array<i64: 64, 1>}, {pipeline_mode = #tpu.pipeline_mode<synchronous>, transform_indices = @transform_2, window_bounds = array<i64: 16, 96>}, {pipeline_mode = #tpu.pipeline_mode<synchronous>, transform_indices = @transform_3, window_bounds = array<i64: 1, 96>}, {pipeline_mode = #tpu.pipeline_mode<synchronous>, transform_indices = @transform_4, window_bounds = array<i64: 32, 96>}, {pipeline_mode = #tpu.pipeline_mode<synchronous>, transform_indices = @transform_5, window_bounds = array<i64: 1, 32>}, {pipeline_mode = #tpu.pipeline_mode<synchronous>, transform_indices = @transform_6, window_bounds = array<i64: 32, 32>}, {pipeline_mode = #tpu.pipeline_mode<synchronous>, transform_indices = @transform_7, window_bounds = array<i64: 32, 32>}, {pipeline_mode = #tpu.pipeline_mode<synchronous>, transform_indices = @transform_8, window_bounds = array<i64: 1, 32>}, {pipeline_mode = #tpu.pipeline_mode<synchronous>, transform_indices = @transform_9, window_bounds = array<i64: 1, 32>}, {pipeline_mode = #tpu.pipeline_mode<synchronous>, transform_indices = @transform_10, window_bounds = array<i64: 32, 128>}, {pipeline_mode = #tpu.pipeline_mode<synchronous>, transform_indices = @transform_11, window_bounds = array<i64: 1, 128>}, {transform_indices = @transform_12, window_bounds = array<i64: 8, 128>}]} {
    %c0 = arith.constant 0 : index
    %c0_0 = arith.constant 0 : index
    %0 = vector.load %arg1[%c0, %c0_0] : memref<64x16xbf16, #tpu.memory_space<vmem>>, vector<64x16xbf16>
    %c0_1 = arith.constant 0 : index
    %c0_2 = arith.constant 0 : index
    %1 = vector.load %arg3[%c0_1, %c0_2] : memref<16x96xbf16, #tpu.memory_space<vmem>>, vector<16x96xbf16>
    %cst = arith.constant dense<0.000000e+00> : vector<64x96xf32>
    %2 = tpu.matmul %0, %1, %cst {dimension_numbers = #tpu.dot_dimension_numbers<[1], [0], [0], [1], [0, 0, 1, 1], [], []>} : vector<64x16xbf16>, vector<16x96xbf16>, vector<64x96xf32> -> vector<64x96xf32>
    %c0_3 = arith.constant 0 : index
    %c0_4 = arith.constant 0 : index
    %3 = vector.load %arg4[%c0_3, %c0_4] : memref<1x96xf32, #tpu.memory_space<vmem>>, vector<1x96xf32>
    %4 = vector.broadcast %3 : vector<1x96xf32> to vector<64x96xf32>
    %5 = arith.addf %2, %4 : vector<64x96xf32>
    %c0_5 = arith.constant 0 : index
    %c0_6 = arith.constant 0 : index
    %6 = vector.load %arg14[%c0_5, %c0_6] : memref<64x96xf32, #tpu.memory_space<vmem>>, vector<64x96xf32>
    tpu.vector_store %arg14[%c0_5, %c0_6], %5 {strides = array<i32>} : memref<64x96xf32, #tpu.memory_space<vmem>>, vector<64x96xf32>,
    %c0_7 = arith.constant 0 : index
    %c0_8 = arith.constant 0 : index
    %7 = vector.load %arg5[%c0_7, %c0_8] : memref<32x96xbf16, #tpu.memory_space<vmem>>, vector<32x96xbf16>
    %c0_9 = arith.constant 0 : index
    %c0_10 = arith.constant 0 : index
    %8 = vector.load %arg6[%c0_9, %c0_10] : memref<1x32xf32, #tpu.memory_space<vmem>>, vector<1x32xf32>
    %cst_11 = arith.constant 0.000000e+00 : f32
    %9 = vector.broadcast %cst_11 : f32 to vector<8x32xf32>
    %c0_i32 = arith.constant 0 : i32
    %c8_i32 = arith.constant 8 : i32
    %10 = arith.muli %c0_i32, %c8_i32 : i32
    %11 = tpu.assume_multiple %10, 8 : i32
    %12 = arith.index_cast %11 : i32 to index
    %c0_12 = arith.constant 0 : index
    %13 = vector.load %arg14[%12, %c0_12] : memref<64x96xf32, #tpu.memory_space<vmem>>, vector<8x96xf32>
    %14 = arith.index_cast %11 : i32 to index
    %c0_13 = arith.constant 0 : index
    %15 = vector.load %arg2[%14, %c0_13] : memref<64x1xf32, #tpu.memory_space<vmem>>, vector<8x1xf32>
    %cst_14 = arith.constant 1.000000e+00 : f32
    %16 = vector.broadcast %cst_14 : f32 to vector<8x1xf32>
    %17 = arith.subf %16, %15 : vector<8x1xf32>
    %18 = arith.truncf %9 : vector<8x32xf32> to vector<8x32xbf16>
    %cst_15 = arith.constant dense<0.000000e+00> : vector<8x96xf32>
    %19 = tpu.matmul %18, %7, %cst_15 {dimension_numbers = #tpu.dot_dimension_numbers<[1], [0], [0], [1], [0, 0, 1, 1], [], []>} : vector<8x32xbf16>, vector<32x96xbf16>, vector<8x96xf32> -> vector<8x96xf32>
    %20 = vector.extract_strided_slice %13 {offsets = [0, 0], sizes = [8, 32], strides = [1, 1]} : vector<8x96xf32> to vector<8x32xf32>
    %21 = vector.extract_strided_slice %19 {offsets = [0, 0], sizes = [8, 32], strides = [1, 1]} : vector<8x96xf32> to vector<8x32xf32>
    %22 = arith.addf %20, %21 : vector<8x32xf32>
    %23 = arith.negf %22 : vector<8x32xf32>
    %24 = math.exp %23 : vector<8x32xf32>
    %cst_16 = arith.constant 1.000000e+00 : f32
    %25 = vector.broadcast %cst_16 : f32 to vector<8x32xf32>
    %26 = arith.addf %25, %24 : vector<8x32xf32>
    %27 = arith.divf %25, %26 : vector<8x32xf32>
    %28 = vector.extract_strided_slice %13 {offsets = [0, 32], sizes = [8, 32], strides = [1, 1]} : vector<8x96xf32> to vector<8x32xf32>
    %29 = vector.extract_strided_slice %19 {offsets = [0, 32], sizes = [8, 32], strides = [1, 1]} : vector<8x96xf32> to vector<8x32xf32>
    %30 = arith.addf %28, %29 : vector<8x32xf32>
    %31 = arith.negf %30 : vector<8x32xf32>
    %32 = math.exp %31 : vector<8x32xf32>
    %cst_17 = arith.constant 1.000000e+00 : f32
    %33 = vector.broadcast %cst_17 : f32 to vector<8x32xf32>
    %34 = arith.addf %33, %32 : vector<8x32xf32>
    %35 = arith.divf %33, %34 : vector<8x32xf32>
    %36 = vector.extract_strided_slice %13 {offsets = [0, 64], sizes = [8, 32], strides = [1, 1]} : vector<8x96xf32> to vector<8x32xf32>
    %37 = vector.extract_strided_slice %19 {offsets = [0, 64], sizes = [8, 32], strides = [1, 1]} : vector<8x96xf32> to vector<8x32xf32>
    %38 = vector.broadcast %8 : vector<1x32xf32> to vector<8x32xf32>
    %39 = arith.addf %37, %38 : vector<8x32xf32>
    %40 = arith.mulf %27, %39 : vector<8x32xf32>
    %41 = arith.addf %36, %40 : vector<8x32xf32>
    %42 = math.tanh %41 : vector<8x32xf32>
    %cst_18 = arith.constant 1.000000e+00 : f32
    %43 = vector.broadcast %cst_18 : f32 to vector<8x32xf32>
    %44 = arith.subf %43, %35 : vector<8x32xf32>
    %45 = arith.mulf %44, %42 : vector<8x32xf32>
    %46 = arith.mulf %35, %9 : vector<8x32xf32>
    %47 = arith.addf %45, %46 : vector<8x32xf32>
    %48 = vector.broadcast %17 : vector<8x1xf32> to vector<8x32xf32>
    %49 = arith.mulf %48, %47 : vector<8x32xf32>
    %50 = arith.index_cast %11 : i32 to index
    %c0_19 = arith.constant 0 : index
    %51 = vector.load %arg15[%50, %c0_19] : memref<64x32xf32, #tpu.memory_space<vmem>>, vector<8x32xf32>
    tpu.vector_store %arg15[%50, %c0_19], %49 {strides = array<i32>} : memref<64x32xf32, #tpu.memory_space<vmem>>, vector<8x32xf32>,
    %cst_20 = arith.constant 1.000000e+00 : f32
    %52 = vector.broadcast %cst_20 : f32 to vector<8x1xf32>
    %53 = arith.subf %52, %17 : vector<8x1xf32>
    %54 = vector.broadcast %53 : vector<8x1xf32> to vector<8x32xf32>
    %55 = arith.mulf %54, %9 : vector<8x32xf32>
    %56 = arith.addf %49, %55 : vector<8x32xf32>
    %c1_i32 = arith.constant 1 : i32
    %c8_i32_21 = arith.constant 8 : i32
    %57 = arith.muli %c1_i32, %c8_i32_21 : i32
    %58 = tpu.assume_multiple %57, 8 : i32
    %59 = arith.index_cast %58 : i32 to index
    %c0_22 = arith.constant 0 : index
    %60 = vector.load %arg14[%59, %c0_22] : memref<64x96xf32, #tpu.memory_space<vmem>>, vector<8x96xf32>
    %61 = arith.index_cast %58 : i32 to index
    %c0_23 = arith.constant 0 : index
    %62 = vector.load %arg2[%61, %c0_23] : memref<64x1xf32, #tpu.memory_space<vmem>>, vector<8x1xf32>
    %cst_24 = arith.constant 1.000000e+00 : f32
    %63 = vector.broadcast %cst_24 : f32 to vector<8x1xf32>
    %64 = arith.subf %63, %62 : vector<8x1xf32>
    %65 = arith.truncf %56 : vector<8x32xf32> to vector<8x32xbf16>
    %cst_25 = arith.constant dense<0.000000e+00> : vector<8x96xf32>
    %66 = tpu.matmul %65, %7, %cst_25 {dimension_numbers = #tpu.dot_dimension_numbers<[1], [0], [0], [1], [0, 0, 1, 1], [], []>} : vector<8x32xbf16>, vector<32x96xbf16>, vector<8x96xf32> -> vector<8x96xf32>
    %67 = vector.extract_strided_slice %60 {offsets = [0, 0], sizes = [8, 32], strides = [1, 1]} : vector<8x96xf32> to vector<8x32xf32>
    %68 = vector.extract_strided_slice %66 {offsets = [0, 0], sizes = [8, 32], strides = [1, 1]} : vector<8x96xf32> to vector<8x32xf32>
    %69 = arith.addf %67, %68 : vector<8x32xf32>
    %70 = arith.negf %69 : vector<8x32xf32>
    %71 = math.exp %70 : vector<8x32xf32>
    %cst_26 = arith.constant 1.000000e+00 : f32
    %72 = vector.broadcast %cst_26 : f32 to vector<8x32xf32>
    %73 = arith.addf %72, %71 : vector<8x32xf32>
    %74 = arith.divf %72, %73 : vector<8x32xf32>
    %75 = vector.extract_strided_slice %60 {offsets = [0, 32], sizes = [8, 32], strides = [1, 1]} : vector<8x96xf32> to vector<8x32xf32>
    %76 = vector.extract_strided_slice %66 {offsets = [0, 32], sizes = [8, 32], strides = [1, 1]} : vector<8x96xf32> to vector<8x32xf32>
    %77 = arith.addf %75, %76 : vector<8x32xf32>
    %78 = arith.negf %77 : vector<8x32xf32>
    %79 = math.exp %78 : vector<8x32xf32>
    %cst_27 = arith.constant 1.000000e+00 : f32
    %80 = vector.broadcast %cst_27 : f32 to vector<8x32xf32>
    %81 = arith.addf %80, %79 : vector<8x32xf32>
    %82 = arith.divf %80, %81 : vector<8x32xf32>
    %83 = vector.extract_strided_slice %60 {offsets = [0, 64], sizes = [8, 32], strides = [1, 1]} : vector<8x96xf32> to vector<8x32xf32>
    %84 = vector.extract_strided_slice %66 {offsets = [0, 64], sizes = [8, 32], strides = [1, 1]} : vector<8x96xf32> to vector<8x32xf32>
    %85 = vector.broadcast %8 : vector<1x32xf32> to vector<8x32xf32>
    %86 = arith.addf %84, %85 : vector<8x32xf32>
    %87 = arith.mulf %74, %86 : vector<8x32xf32>
    %88 = arith.addf %83, %87 : vector<8x32xf32>
    %89 = math.tanh %88 : vector<8x32xf32>
    %cst_28 = arith.constant 1.000000e+00 : f32
    %90 = vector.broadcast %cst_28 : f32 to vector<8x32xf32>
    %91 = arith.subf %90, %82 : vector<8x32xf32>
    %92 = arith.mulf %91, %89 : vector<8x32xf32>
    %93 = arith.mulf %82, %56 : vector<8x32xf32>
    %94 = arith.addf %92, %93 : vector<8x32xf32>
    %95 = vector.broadcast %64 : vector<8x1xf32> to vector<8x32xf32>
    %96 = arith.mulf %95, %94 : vector<8x32xf32>
    %97 = arith.index_cast %58 : i32 to index
    %c0_29 = arith.constant 0 : index
    %98 = vector.load %arg15[%97, %c0_29] : memref<64x32xf32, #tpu.memory_space<vmem>>, vector<8x32xf32>
    tpu.vector_store %arg15[%97, %c0_29], %96 {strides = array<i32>} : memref<64x32xf32, #tpu.memory_space<vmem>>, vector<8x32xf32>,
    %cst_30 = arith.constant 1.000000e+00 : f32
    %99 = vector.broadcast %cst_30 : f32 to vector<8x1xf32>
    %100 = arith.subf %99, %64 : vector<8x1xf32>
    %101 = vector.broadcast %100 : vector<8x1xf32> to vector<8x32xf32>
    %102 = arith.mulf %101, %56 : vector<8x32xf32>
    %103 = arith.addf %96, %102 : vector<8x32xf32>
    %c2_i32 = arith.constant 2 : i32
    %c8_i32_31 = arith.constant 8 : i32
    %104 = arith.muli %c2_i32, %c8_i32_31 : i32
    %105 = tpu.assume_multiple %104, 8 : i32
    %106 = arith.index_cast %105 : i32 to index
    %c0_32 = arith.constant 0 : index
    %107 = vector.load %arg14[%106, %c0_32] : memref<64x96xf32, #tpu.memory_space<vmem>>, vector<8x96xf32>
    %108 = arith.index_cast %105 : i32 to index
    %c0_33 = arith.constant 0 : index
    %109 = vector.load %arg2[%108, %c0_33] : memref<64x1xf32, #tpu.memory_space<vmem>>, vector<8x1xf32>
    %cst_34 = arith.constant 1.000000e+00 : f32
    %110 = vector.broadcast %cst_34 : f32 to vector<8x1xf32>
    %111 = arith.subf %110, %109 : vector<8x1xf32>
    %112 = arith.truncf %103 : vector<8x32xf32> to vector<8x32xbf16>
    %cst_35 = arith.constant dense<0.000000e+00> : vector<8x96xf32>
    %113 = tpu.matmul %112, %7, %cst_35 {dimension_numbers = #tpu.dot_dimension_numbers<[1], [0], [0], [1], [0, 0, 1, 1], [], []>} : vector<8x32xbf16>, vector<32x96xbf16>, vector<8x96xf32> -> vector<8x96xf32>
    %114 = vector.extract_strided_slice %107 {offsets = [0, 0], sizes = [8, 32], strides = [1, 1]} : vector<8x96xf32> to vector<8x32xf32>
    %115 = vector.extract_strided_slice %113 {offsets = [0, 0], sizes = [8, 32], strides = [1, 1]} : vector<8x96xf32> to vector<8x32xf32>
    %116 = arith.addf %114, %115 : vector<8x32xf32>
    %117 = arith.negf %116 : vector<8x32xf32>
    %118 = math.exp %117 : vector<8x32xf32>
    %cst_36 = arith.constant 1.000000e+00 : f32
    %119 = vector.broadcast %cst_36 : f32 to vector<8x32xf32>
    %120 = arith.addf %119, %118 : vector<8x32xf32>
    %121 = arith.divf %119, %120 : vector<8x32xf32>
    %122 = vector.extract_strided_slice %107 {offsets = [0, 32], sizes = [8, 32], strides = [1, 1]} : vector<8x96xf32> to vector<8x32xf32>
    %123 = vector.extract_strided_slice %113 {offsets = [0, 32], sizes = [8, 32], strides = [1, 1]} : vector<8x96xf32> to vector<8x32xf32>
    %124 = arith.addf %122, %123 : vector<8x32xf32>
    %125 = arith.negf %124 : vector<8x32xf32>
    %126 = math.exp %125 : vector<8x32xf32>
    %cst_37 = arith.constant 1.000000e+00 : f32
    %127 = vector.broadcast %cst_37 : f32 to vector<8x32xf32>
    %128 = arith.addf %127, %126 : vector<8x32xf32>
    %129 = arith.divf %127, %128 : vector<8x32xf32>
    %130 = vector.extract_strided_slice %107 {offsets = [0, 64], sizes = [8, 32], strides = [1, 1]} : vector<8x96xf32> to vector<8x32xf32>
    %131 = vector.extract_strided_slice %113 {offsets = [0, 64], sizes = [8, 32], strides = [1, 1]} : vector<8x96xf32> to vector<8x32xf32>
    %132 = vector.broadcast %8 : vector<1x32xf32> to vector<8x32xf32>
    %133 = arith.addf %131, %132 : vector<8x32xf32>
    %134 = arith.mulf %121, %133 : vector<8x32xf32>
    %135 = arith.addf %130, %134 : vector<8x32xf32>
    %136 = math.tanh %135 : vector<8x32xf32>
    %cst_38 = arith.constant 1.000000e+00 : f32
    %137 = vector.broadcast %cst_38 : f32 to vector<8x32xf32>
    %138 = arith.subf %137, %129 : vector<8x32xf32>
    %139 = arith.mulf %138, %136 : vector<8x32xf32>
    %140 = arith.mulf %129, %103 : vector<8x32xf32>
    %141 = arith.addf %139, %140 : vector<8x32xf32>
    %142 = vector.broadcast %111 : vector<8x1xf32> to vector<8x32xf32>
    %143 = arith.mulf %142, %141 : vector<8x32xf32>
    %144 = arith.index_cast %105 : i32 to index
    %c0_39 = arith.constant 0 : index
    %145 = vector.load %arg15[%144, %c0_39] : memref<64x32xf32, #tpu.memory_space<vmem>>, vector<8x32xf32>
    tpu.vector_store %arg15[%144, %c0_39], %143 {strides = array<i32>} : memref<64x32xf32, #tpu.memory_space<vmem>>, vector<8x32xf32>,
    %cst_40 = arith.constant 1.000000e+00 : f32
    %146 = vector.broadcast %cst_40 : f32 to vector<8x1xf32>
    %147 = arith.subf %146, %111 : vector<8x1xf32>
    %148 = vector.broadcast %147 : vector<8x1xf32> to vector<8x32xf32>
    %149 = arith.mulf %148, %103 : vector<8x32xf32>
    %150 = arith.addf %143, %149 : vector<8x32xf32>
    %c3_i32 = arith.constant 3 : i32
    %c8_i32_41 = arith.constant 8 : i32
    %151 = arith.muli %c3_i32, %c8_i32_41 : i32
    %152 = tpu.assume_multiple %151, 8 : i32
    %153 = arith.index_cast %152 : i32 to index
    %c0_42 = arith.constant 0 : index
    %154 = vector.load %arg14[%153, %c0_42] : memref<64x96xf32, #tpu.memory_space<vmem>>, vector<8x96xf32>
    %155 = arith.index_cast %152 : i32 to index
    %c0_43 = arith.constant 0 : index
    %156 = vector.load %arg2[%155, %c0_43] : memref<64x1xf32, #tpu.memory_space<vmem>>, vector<8x1xf32>
    %cst_44 = arith.constant 1.000000e+00 : f32
    %157 = vector.broadcast %cst_44 : f32 to vector<8x1xf32>
    %158 = arith.subf %157, %156 : vector<8x1xf32>
    %159 = arith.truncf %150 : vector<8x32xf32> to vector<8x32xbf16>
    %cst_45 = arith.constant dense<0.000000e+00> : vector<8x96xf32>
    %160 = tpu.matmul %159, %7, %cst_45 {dimension_numbers = #tpu.dot_dimension_numbers<[1], [0], [0], [1], [0, 0, 1, 1], [], []>} : vector<8x32xbf16>, vector<32x96xbf16>, vector<8x96xf32> -> vector<8x96xf32>
    %161 = vector.extract_strided_slice %154 {offsets = [0, 0], sizes = [8, 32], strides = [1, 1]} : vector<8x96xf32> to vector<8x32xf32>
    %162 = vector.extract_strided_slice %160 {offsets = [0, 0], sizes = [8, 32], strides = [1, 1]} : vector<8x96xf32> to vector<8x32xf32>
    %163 = arith.addf %161, %162 : vector<8x32xf32>
    %164 = arith.negf %163 : vector<8x32xf32>
    %165 = math.exp %164 : vector<8x32xf32>
    %cst_46 = arith.constant 1.000000e+00 : f32
    %166 = vector.broadcast %cst_46 : f32 to vector<8x32xf32>
    %167 = arith.addf %166, %165 : vector<8x32xf32>
    %168 = arith.divf %166, %167 : vector<8x32xf32>
    %169 = vector.extract_strided_slice %154 {offsets = [0, 32], sizes = [8, 32], strides = [1, 1]} : vector<8x96xf32> to vector<8x32xf32>
    %170 = vector.extract_strided_slice %160 {offsets = [0, 32], sizes = [8, 32], strides = [1, 1]} : vector<8x96xf32> to vector<8x32xf32>
    %171 = arith.addf %169, %170 : vector<8x32xf32>
    %172 = arith.negf %171 : vector<8x32xf32>
    %173 = math.exp %172 : vector<8x32xf32>
    %cst_47 = arith.constant 1.000000e+00 : f32
    %174 = vector.broadcast %cst_47 : f32 to vector<8x32xf32>
    %175 = arith.addf %174, %173 : vector<8x32xf32>
    %176 = arith.divf %174, %175 : vector<8x32xf32>
    %177 = vector.extract_strided_slice %154 {offsets = [0, 64], sizes = [8, 32], strides = [1, 1]} : vector<8x96xf32> to vector<8x32xf32>
    %178 = vector.extract_strided_slice %160 {offsets = [0, 64], sizes = [8, 32], strides = [1, 1]} : vector<8x96xf32> to vector<8x32xf32>
    %179 = vector.broadcast %8 : vector<1x32xf32> to vector<8x32xf32>
    %180 = arith.addf %178, %179 : vector<8x32xf32>
    %181 = arith.mulf %168, %180 : vector<8x32xf32>
    %182 = arith.addf %177, %181 : vector<8x32xf32>
    %183 = math.tanh %182 : vector<8x32xf32>
    %cst_48 = arith.constant 1.000000e+00 : f32
    %184 = vector.broadcast %cst_48 : f32 to vector<8x32xf32>
    %185 = arith.subf %184, %176 : vector<8x32xf32>
    %186 = arith.mulf %185, %183 : vector<8x32xf32>
    %187 = arith.mulf %176, %150 : vector<8x32xf32>
    %188 = arith.addf %186, %187 : vector<8x32xf32>
    %189 = vector.broadcast %158 : vector<8x1xf32> to vector<8x32xf32>
    %190 = arith.mulf %189, %188 : vector<8x32xf32>
    %191 = arith.index_cast %152 : i32 to index
    %c0_49 = arith.constant 0 : index
    %192 = vector.load %arg15[%191, %c0_49] : memref<64x32xf32, #tpu.memory_space<vmem>>, vector<8x32xf32>
    tpu.vector_store %arg15[%191, %c0_49], %190 {strides = array<i32>} : memref<64x32xf32, #tpu.memory_space<vmem>>, vector<8x32xf32>,
    %cst_50 = arith.constant 1.000000e+00 : f32
    %193 = vector.broadcast %cst_50 : f32 to vector<8x1xf32>
    %194 = arith.subf %193, %158 : vector<8x1xf32>
    %195 = vector.broadcast %194 : vector<8x1xf32> to vector<8x32xf32>
    %196 = arith.mulf %195, %150 : vector<8x32xf32>
    %197 = arith.addf %190, %196 : vector<8x32xf32>
    %c4_i32 = arith.constant 4 : i32
    %c8_i32_51 = arith.constant 8 : i32
    %198 = arith.muli %c4_i32, %c8_i32_51 : i32
    %199 = tpu.assume_multiple %198, 8 : i32
    %200 = arith.index_cast %199 : i32 to index
    %c0_52 = arith.constant 0 : index
    %201 = vector.load %arg14[%200, %c0_52] : memref<64x96xf32, #tpu.memory_space<vmem>>, vector<8x96xf32>
    %202 = arith.index_cast %199 : i32 to index
    %c0_53 = arith.constant 0 : index
    %203 = vector.load %arg2[%202, %c0_53] : memref<64x1xf32, #tpu.memory_space<vmem>>, vector<8x1xf32>
    %cst_54 = arith.constant 1.000000e+00 : f32
    %204 = vector.broadcast %cst_54 : f32 to vector<8x1xf32>
    %205 = arith.subf %204, %203 : vector<8x1xf32>
    %206 = arith.truncf %197 : vector<8x32xf32> to vector<8x32xbf16>
    %cst_55 = arith.constant dense<0.000000e+00> : vector<8x96xf32>
    %207 = tpu.matmul %206, %7, %cst_55 {dimension_numbers = #tpu.dot_dimension_numbers<[1], [0], [0], [1], [0, 0, 1, 1], [], []>} : vector<8x32xbf16>, vector<32x96xbf16>, vector<8x96xf32> -> vector<8x96xf32>
    %208 = vector.extract_strided_slice %201 {offsets = [0, 0], sizes = [8, 32], strides = [1, 1]} : vector<8x96xf32> to vector<8x32xf32>
    %209 = vector.extract_strided_slice %207 {offsets = [0, 0], sizes = [8, 32], strides = [1, 1]} : vector<8x96xf32> to vector<8x32xf32>
    %210 = arith.addf %208, %209 : vector<8x32xf32>
    %211 = arith.negf %210 : vector<8x32xf32>
    %212 = math.exp %211 : vector<8x32xf32>
    %cst_56 = arith.constant 1.000000e+00 : f32
    %213 = vector.broadcast %cst_56 : f32 to vector<8x32xf32>
    %214 = arith.addf %213, %212 : vector<8x32xf32>
    %215 = arith.divf %213, %214 : vector<8x32xf32>
    %216 = vector.extract_strided_slice %201 {offsets = [0, 32], sizes = [8, 32], strides = [1, 1]} : vector<8x96xf32> to vector<8x32xf32>
    %217 = vector.extract_strided_slice %207 {offsets = [0, 32], sizes = [8, 32], strides = [1, 1]} : vector<8x96xf32> to vector<8x32xf32>
    %218 = arith.addf %216, %217 : vector<8x32xf32>
    %219 = arith.negf %218 : vector<8x32xf32>
    %220 = math.exp %219 : vector<8x32xf32>
    %cst_57 = arith.constant 1.000000e+00 : f32
    %221 = vector.broadcast %cst_57 : f32 to vector<8x32xf32>
    %222 = arith.addf %221, %220 : vector<8x32xf32>
    %223 = arith.divf %221, %222 : vector<8x32xf32>
    %224 = vector.extract_strided_slice %201 {offsets = [0, 64], sizes = [8, 32], strides = [1, 1]} : vector<8x96xf32> to vector<8x32xf32>
    %225 = vector.extract_strided_slice %207 {offsets = [0, 64], sizes = [8, 32], strides = [1, 1]} : vector<8x96xf32> to vector<8x32xf32>
    %226 = vector.broadcast %8 : vector<1x32xf32> to vector<8x32xf32>
    %227 = arith.addf %225, %226 : vector<8x32xf32>
    %228 = arith.mulf %215, %227 : vector<8x32xf32>
    %229 = arith.addf %224, %228 : vector<8x32xf32>
    %230 = math.tanh %229 : vector<8x32xf32>
    %cst_58 = arith.constant 1.000000e+00 : f32
    %231 = vector.broadcast %cst_58 : f32 to vector<8x32xf32>
    %232 = arith.subf %231, %223 : vector<8x32xf32>
    %233 = arith.mulf %232, %230 : vector<8x32xf32>
    %234 = arith.mulf %223, %197 : vector<8x32xf32>
    %235 = arith.addf %233, %234 : vector<8x32xf32>
    %236 = vector.broadcast %205 : vector<8x1xf32> to vector<8x32xf32>
    %237 = arith.mulf %236, %235 : vector<8x32xf32>
    %238 = arith.index_cast %199 : i32 to index
    %c0_59 = arith.constant 0 : index
    %239 = vector.load %arg15[%238, %c0_59] : memref<64x32xf32, #tpu.memory_space<vmem>>, vector<8x32xf32>
    tpu.vector_store %arg15[%238, %c0_59], %237 {strides = array<i32>} : memref<64x32xf32, #tpu.memory_space<vmem>>, vector<8x32xf32>,
    %cst_60 = arith.constant 1.000000e+00 : f32
    %240 = vector.broadcast %cst_60 : f32 to vector<8x1xf32>
    %241 = arith.subf %240, %205 : vector<8x1xf32>
    %242 = vector.broadcast %241 : vector<8x1xf32> to vector<8x32xf32>
    %243 = arith.mulf %242, %197 : vector<8x32xf32>
    %244 = arith.addf %237, %243 : vector<8x32xf32>
    %c5_i32 = arith.constant 5 : i32
    %c8_i32_61 = arith.constant 8 : i32
    %245 = arith.muli %c5_i32, %c8_i32_61 : i32
    %246 = tpu.assume_multiple %245, 8 : i32
    %247 = arith.index_cast %246 : i32 to index
    %c0_62 = arith.constant 0 : index
    %248 = vector.load %arg14[%247, %c0_62] : memref<64x96xf32, #tpu.memory_space<vmem>>, vector<8x96xf32>
    %249 = arith.index_cast %246 : i32 to index
    %c0_63 = arith.constant 0 : index
    %250 = vector.load %arg2[%249, %c0_63] : memref<64x1xf32, #tpu.memory_space<vmem>>, vector<8x1xf32>
    %cst_64 = arith.constant 1.000000e+00 : f32
    %251 = vector.broadcast %cst_64 : f32 to vector<8x1xf32>
    %252 = arith.subf %251, %250 : vector<8x1xf32>
    %253 = arith.truncf %244 : vector<8x32xf32> to vector<8x32xbf16>
    %cst_65 = arith.constant dense<0.000000e+00> : vector<8x96xf32>
    %254 = tpu.matmul %253, %7, %cst_65 {dimension_numbers = #tpu.dot_dimension_numbers<[1], [0], [0], [1], [0, 0, 1, 1], [], []>} : vector<8x32xbf16>, vector<32x96xbf16>, vector<8x96xf32> -> vector<8x96xf32>
    %255 = vector.extract_strided_slice %248 {offsets = [0, 0], sizes = [8, 32], strides = [1, 1]} : vector<8x96xf32> to vector<8x32xf32>
    %256 = vector.extract_strided_slice %254 {offsets = [0, 0], sizes = [8, 32], strides = [1, 1]} : vector<8x96xf32> to vector<8x32xf32>
    %257 = arith.addf %255, %256 : vector<8x32xf32>
    %258 = arith.negf %257 : vector<8x32xf32>
    %259 = math.exp %258 : vector<8x32xf32>
    %cst_66 = arith.constant 1.000000e+00 : f32
    %260 = vector.broadcast %cst_66 : f32 to vector<8x32xf32>
    %261 = arith.addf %260, %259 : vector<8x32xf32>
    %262 = arith.divf %260, %261 : vector<8x32xf32>
    %263 = vector.extract_strided_slice %248 {offsets = [0, 32], sizes = [8, 32], strides = [1, 1]} : vector<8x96xf32> to vector<8x32xf32>
    %264 = vector.extract_strided_slice %254 {offsets = [0, 32], sizes = [8, 32], strides = [1, 1]} : vector<8x96xf32> to vector<8x32xf32>
    %265 = arith.addf %263, %264 : vector<8x32xf32>
    %266 = arith.negf %265 : vector<8x32xf32>
    %267 = math.exp %266 : vector<8x32xf32>
    %cst_67 = arith.constant 1.000000e+00 : f32
    %268 = vector.broadcast %cst_67 : f32 to vector<8x32xf32>
    %269 = arith.addf %268, %267 : vector<8x32xf32>
    %270 = arith.divf %268, %269 : vector<8x32xf32>
    %271 = vector.extract_strided_slice %248 {offsets = [0, 64], sizes = [8, 32], strides = [1, 1]} : vector<8x96xf32> to vector<8x32xf32>
    %272 = vector.extract_strided_slice %254 {offsets = [0, 64], sizes = [8, 32], strides = [1, 1]} : vector<8x96xf32> to vector<8x32xf32>
    %273 = vector.broadcast %8 : vector<1x32xf32> to vector<8x32xf32>
    %274 = arith.addf %272, %273 : vector<8x32xf32>
    %275 = arith.mulf %262, %274 : vector<8x32xf32>
    %276 = arith.addf %271, %275 : vector<8x32xf32>
    %277 = math.tanh %276 : vector<8x32xf32>
    %cst_68 = arith.constant 1.000000e+00 : f32
    %278 = vector.broadcast %cst_68 : f32 to vector<8x32xf32>
    %279 = arith.subf %278, %270 : vector<8x32xf32>
    %280 = arith.mulf %279, %277 : vector<8x32xf32>
    %281 = arith.mulf %270, %244 : vector<8x32xf32>
    %282 = arith.addf %280, %281 : vector<8x32xf32>
    %283 = vector.broadcast %252 : vector<8x1xf32> to vector<8x32xf32>
    %284 = arith.mulf %283, %282 : vector<8x32xf32>
    %285 = arith.index_cast %246 : i32 to index
    %c0_69 = arith.constant 0 : index
    %286 = vector.load %arg15[%285, %c0_69] : memref<64x32xf32, #tpu.memory_space<vmem>>, vector<8x32xf32>
    tpu.vector_store %arg15[%285, %c0_69], %284 {strides = array<i32>} : memref<64x32xf32, #tpu.memory_space<vmem>>, vector<8x32xf32>,
    %cst_70 = arith.constant 1.000000e+00 : f32
    %287 = vector.broadcast %cst_70 : f32 to vector<8x1xf32>
    %288 = arith.subf %287, %252 : vector<8x1xf32>
    %289 = vector.broadcast %288 : vector<8x1xf32> to vector<8x32xf32>
    %290 = arith.mulf %289, %244 : vector<8x32xf32>
    %291 = arith.addf %284, %290 : vector<8x32xf32>
    %c6_i32 = arith.constant 6 : i32
    %c8_i32_71 = arith.constant 8 : i32
    %292 = arith.muli %c6_i32, %c8_i32_71 : i32
    %293 = tpu.assume_multiple %292, 8 : i32
    %294 = arith.index_cast %293 : i32 to index
    %c0_72 = arith.constant 0 : index
    %295 = vector.load %arg14[%294, %c0_72] : memref<64x96xf32, #tpu.memory_space<vmem>>, vector<8x96xf32>
    %296 = arith.index_cast %293 : i32 to index
    %c0_73 = arith.constant 0 : index
    %297 = vector.load %arg2[%296, %c0_73] : memref<64x1xf32, #tpu.memory_space<vmem>>, vector<8x1xf32>
    %cst_74 = arith.constant 1.000000e+00 : f32
    %298 = vector.broadcast %cst_74 : f32 to vector<8x1xf32>
    %299 = arith.subf %298, %297 : vector<8x1xf32>
    %300 = arith.truncf %291 : vector<8x32xf32> to vector<8x32xbf16>
    %cst_75 = arith.constant dense<0.000000e+00> : vector<8x96xf32>
    %301 = tpu.matmul %300, %7, %cst_75 {dimension_numbers = #tpu.dot_dimension_numbers<[1], [0], [0], [1], [0, 0, 1, 1], [], []>} : vector<8x32xbf16>, vector<32x96xbf16>, vector<8x96xf32> -> vector<8x96xf32>
    %302 = vector.extract_strided_slice %295 {offsets = [0, 0], sizes = [8, 32], strides = [1, 1]} : vector<8x96xf32> to vector<8x32xf32>
    %303 = vector.extract_strided_slice %301 {offsets = [0, 0], sizes = [8, 32], strides = [1, 1]} : vector<8x96xf32> to vector<8x32xf32>
    %304 = arith.addf %302, %303 : vector<8x32xf32>
    %305 = arith.negf %304 : vector<8x32xf32>
    %306 = math.exp %305 : vector<8x32xf32>
    %cst_76 = arith.constant 1.000000e+00 : f32
    %307 = vector.broadcast %cst_76 : f32 to vector<8x32xf32>
    %308 = arith.addf %307, %306 : vector<8x32xf32>
    %309 = arith.divf %307, %308 : vector<8x32xf32>
    %310 = vector.extract_strided_slice %295 {offsets = [0, 32], sizes = [8, 32], strides = [1, 1]} : vector<8x96xf32> to vector<8x32xf32>
    %311 = vector.extract_strided_slice %301 {offsets = [0, 32], sizes = [8, 32], strides = [1, 1]} : vector<8x96xf32> to vector<8x32xf32>
    %312 = arith.addf %310, %311 : vector<8x32xf32>
    %313 = arith.negf %312 : vector<8x32xf32>
    %314 = math.exp %313 : vector<8x32xf32>
    %cst_77 = arith.constant 1.000000e+00 : f32
    %315 = vector.broadcast %cst_77 : f32 to vector<8x32xf32>
    %316 = arith.addf %315, %314 : vector<8x32xf32>
    %317 = arith.divf %315, %316 : vector<8x32xf32>
    %318 = vector.extract_strided_slice %295 {offsets = [0, 64], sizes = [8, 32], strides = [1, 1]} : vector<8x96xf32> to vector<8x32xf32>
    %319 = vector.extract_strided_slice %301 {offsets = [0, 64], sizes = [8, 32], strides = [1, 1]} : vector<8x96xf32> to vector<8x32xf32>
    %320 = vector.broadcast %8 : vector<1x32xf32> to vector<8x32xf32>
    %321 = arith.addf %319, %320 : vector<8x32xf32>
    %322 = arith.mulf %309, %321 : vector<8x32xf32>
    %323 = arith.addf %318, %322 : vector<8x32xf32>
    %324 = math.tanh %323 : vector<8x32xf32>
    %cst_78 = arith.constant 1.000000e+00 : f32
    %325 = vector.broadcast %cst_78 : f32 to vector<8x32xf32>
    %326 = arith.subf %325, %317 : vector<8x32xf32>
    %327 = arith.mulf %326, %324 : vector<8x32xf32>
    %328 = arith.mulf %317, %291 : vector<8x32xf32>
    %329 = arith.addf %327, %328 : vector<8x32xf32>
    %330 = vector.broadcast %299 : vector<8x1xf32> to vector<8x32xf32>
    %331 = arith.mulf %330, %329 : vector<8x32xf32>
    %332 = arith.index_cast %293 : i32 to index
    %c0_79 = arith.constant 0 : index
    %333 = vector.load %arg15[%332, %c0_79] : memref<64x32xf32, #tpu.memory_space<vmem>>, vector<8x32xf32>
    tpu.vector_store %arg15[%332, %c0_79], %331 {strides = array<i32>} : memref<64x32xf32, #tpu.memory_space<vmem>>, vector<8x32xf32>,
    %cst_80 = arith.constant 1.000000e+00 : f32
    %334 = vector.broadcast %cst_80 : f32 to vector<8x1xf32>
    %335 = arith.subf %334, %299 : vector<8x1xf32>
    %336 = vector.broadcast %335 : vector<8x1xf32> to vector<8x32xf32>
    %337 = arith.mulf %336, %291 : vector<8x32xf32>
    %338 = arith.addf %331, %337 : vector<8x32xf32>
    %c7_i32 = arith.constant 7 : i32
    %c8_i32_81 = arith.constant 8 : i32
    %339 = arith.muli %c7_i32, %c8_i32_81 : i32
    %340 = tpu.assume_multiple %339, 8 : i32
    %341 = arith.index_cast %340 : i32 to index
    %c0_82 = arith.constant 0 : index
    %342 = vector.load %arg14[%341, %c0_82] : memref<64x96xf32, #tpu.memory_space<vmem>>, vector<8x96xf32>
    %343 = arith.index_cast %340 : i32 to index
    %c0_83 = arith.constant 0 : index
    %344 = vector.load %arg2[%343, %c0_83] : memref<64x1xf32, #tpu.memory_space<vmem>>, vector<8x1xf32>
    %cst_84 = arith.constant 1.000000e+00 : f32
    %345 = vector.broadcast %cst_84 : f32 to vector<8x1xf32>
    %346 = arith.subf %345, %344 : vector<8x1xf32>
    %347 = arith.truncf %338 : vector<8x32xf32> to vector<8x32xbf16>
    %cst_85 = arith.constant dense<0.000000e+00> : vector<8x96xf32>
    %348 = tpu.matmul %347, %7, %cst_85 {dimension_numbers = #tpu.dot_dimension_numbers<[1], [0], [0], [1], [0, 0, 1, 1], [], []>} : vector<8x32xbf16>, vector<32x96xbf16>, vector<8x96xf32> -> vector<8x96xf32>
    %349 = vector.extract_strided_slice %342 {offsets = [0, 0], sizes = [8, 32], strides = [1, 1]} : vector<8x96xf32> to vector<8x32xf32>
    %350 = vector.extract_strided_slice %348 {offsets = [0, 0], sizes = [8, 32], strides = [1, 1]} : vector<8x96xf32> to vector<8x32xf32>
    %351 = arith.addf %349, %350 : vector<8x32xf32>
    %352 = arith.negf %351 : vector<8x32xf32>
    %353 = math.exp %352 : vector<8x32xf32>
    %cst_86 = arith.constant 1.000000e+00 : f32
    %354 = vector.broadcast %cst_86 : f32 to vector<8x32xf32>
    %355 = arith.addf %354, %353 : vector<8x32xf32>
    %356 = arith.divf %354, %355 : vector<8x32xf32>
    %357 = vector.extract_strided_slice %342 {offsets = [0, 32], sizes = [8, 32], strides = [1, 1]} : vector<8x96xf32> to vector<8x32xf32>
    %358 = vector.extract_strided_slice %348 {offsets = [0, 32], sizes = [8, 32], strides = [1, 1]} : vector<8x96xf32> to vector<8x32xf32>
    %359 = arith.addf %357, %358 : vector<8x32xf32>
    %360 = arith.negf %359 : vector<8x32xf32>
    %361 = math.exp %360 : vector<8x32xf32>
    %cst_87 = arith.constant 1.000000e+00 : f32
    %362 = vector.broadcast %cst_87 : f32 to vector<8x32xf32>
    %363 = arith.addf %362, %361 : vector<8x32xf32>
    %364 = arith.divf %362, %363 : vector<8x32xf32>
    %365 = vector.extract_strided_slice %342 {offsets = [0, 64], sizes = [8, 32], strides = [1, 1]} : vector<8x96xf32> to vector<8x32xf32>
    %366 = vector.extract_strided_slice %348 {offsets = [0, 64], sizes = [8, 32], strides = [1, 1]} : vector<8x96xf32> to vector<8x32xf32>
    %367 = vector.broadcast %8 : vector<1x32xf32> to vector<8x32xf32>
    %368 = arith.addf %366, %367 : vector<8x32xf32>
    %369 = arith.mulf %356, %368 : vector<8x32xf32>
    %370 = arith.addf %365, %369 : vector<8x32xf32>
    %371 = math.tanh %370 : vector<8x32xf32>
    %cst_88 = arith.constant 1.000000e+00 : f32
    %372 = vector.broadcast %cst_88 : f32 to vector<8x32xf32>
    %373 = arith.subf %372, %364 : vector<8x32xf32>
    %374 = arith.mulf %373, %371 : vector<8x32xf32>
    %375 = arith.mulf %364, %338 : vector<8x32xf32>
    %376 = arith.addf %374, %375 : vector<8x32xf32>
    %377 = vector.broadcast %346 : vector<8x1xf32> to vector<8x32xf32>
    %378 = arith.mulf %377, %376 : vector<8x32xf32>
    %379 = arith.index_cast %340 : i32 to index
    %c0_89 = arith.constant 0 : index
    %380 = vector.load %arg15[%379, %c0_89] : memref<64x32xf32, #tpu.memory_space<vmem>>, vector<8x32xf32>
    tpu.vector_store %arg15[%379, %c0_89], %378 {strides = array<i32>} : memref<64x32xf32, #tpu.memory_space<vmem>>, vector<8x32xf32>,
    %cst_90 = arith.constant 1.000000e+00 : f32
    %381 = vector.broadcast %cst_90 : f32 to vector<8x1xf32>
    %382 = arith.subf %381, %346 : vector<8x1xf32>
    %383 = vector.broadcast %382 : vector<8x1xf32> to vector<8x32xf32>
    %384 = arith.mulf %383, %338 : vector<8x32xf32>
    %385 = arith.addf %378, %384 : vector<8x32xf32>
    %c8_i32_91 = arith.constant 8 : i32
    %386 = arith.truncf %385 : vector<8x32xf32> to vector<8x32xbf16>
    %c0_92 = arith.constant 0 : index
    %c0_93 = arith.constant 0 : index
    %387 = vector.load %arg8[%c0_92, %c0_93] : memref<32x32xbf16, #tpu.memory_space<vmem>>, vector<32x32xbf16>
    %cst_94 = arith.constant dense<0.000000e+00> : vector<8x32xf32>
    %388 = tpu.matmul %386, %387, %cst_94 {dimension_numbers = #tpu.dot_dimension_numbers<[1], [0], [0], [1], [0, 0, 1, 1], [], []>} : vector<8x32xbf16>, vector<32x32xbf16>, vector<8x32xf32> -> vector<8x32xf32>
    %c0_95 = arith.constant 0 : index
    %c0_96 = arith.constant 0 : index
    %389 = vector.load %arg9[%c0_95, %c0_96] : memref<1x32xf32, #tpu.memory_space<vmem>>, vector<1x32xf32>
    %390 = vector.broadcast %389 : vector<1x32xf32> to vector<8x32xf32>
    %391 = arith.addf %388, %390 : vector<8x32xf32>
    %c0_97 = arith.constant 0 : index
    %c0_98 = arith.constant 0 : index
    %392 = vector.load %arg15[%c0_97, %c0_98] : memref<64x32xf32, #tpu.memory_space<vmem>>, vector<64x32xf32>
    %393 = arith.truncf %392 : vector<64x32xf32> to vector<64x32xbf16>
    %c0_99 = arith.constant 0 : index
    %c0_100 = arith.constant 0 : index
    %394 = vector.load %arg7[%c0_99, %c0_100] : memref<32x32xbf16, #tpu.memory_space<vmem>>, vector<32x32xbf16>
    %cst_101 = arith.constant dense<0.000000e+00> : vector<64x32xf32>
    %395 = tpu.matmul %393, %394, %cst_101 {dimension_numbers = #tpu.dot_dimension_numbers<[1], [0], [0], [1], [0, 0, 1, 1], [], []>} : vector<64x32xbf16>, vector<32x32xbf16>, vector<64x32xf32> -> vector<64x32xf32>
    %c0_102 = arith.constant 0 : index
    %c0_103 = arith.constant 0 : index
    %396 = vector.load %arg16[%c0_102, %c0_103] : memref<64x32xf32, #tpu.memory_space<vmem>>, vector<64x32xf32>
    tpu.vector_store %arg16[%c0_102, %c0_103], %395 {strides = array<i32>} : memref<64x32xf32, #tpu.memory_space<vmem>>, vector<64x32xf32>,
    %c0_104 = arith.constant 0 : index
    %c0_105 = arith.constant 0 : index
    %397 = vector.load %arg10[%c0_104, %c0_105] : memref<1x32xf32, #tpu.memory_space<vmem>>, vector<1x32xf32>
    %cst_106 = arith.constant -1.000000e+30 : f32
    %398 = vector.broadcast %cst_106 : f32 to vector<8x1xf32>
    %cst_107 = arith.constant 0.000000e+00 : f32
    %399 = vector.broadcast %cst_107 : f32 to vector<8x1xf32>
    %cst_108 = arith.constant 0.000000e+00 : f32
    %400 = vector.broadcast %cst_108 : f32 to vector<8x32xf32>
    %cst_109 = arith.constant -1.000000e+30 : f32
    %c0_i32_110 = arith.constant 0 : i32
    %c8_i32_111 = arith.constant 8 : i32
    %401 = arith.muli %c0_i32_110, %c8_i32_111 : i32
    %402 = tpu.assume_multiple %401, 8 : i32
    %403 = arith.index_cast %402 : i32 to index
    %c0_112 = arith.constant 0 : index
    %404 = vector.load %arg16[%403, %c0_112] : memref<64x32xf32, #tpu.memory_space<vmem>>, vector<8x32xf32>
    %405 = arith.addf %404, %391 : vector<8x32xf32>
    %406 = math.tanh %405 : vector<8x32xf32>
    %407 = vector.broadcast %397 : vector<1x32xf32> to vector<8x32xf32>
    %408 = arith.mulf %406, %407 : vector<8x32xf32>
    %cst_113 = arith.constant dense<0.000000e+00> : vector<8xf32>
    %409 = vector.multi_reduction <add>, %408, %cst_113 [1] : vector<8x32xf32> to vector<8xf32>
    %410 = vector.shape_cast %409 : vector<8xf32> to vector<8x1xf32>
    %411 = arith.index_cast %402 : i32 to index
    %c0_114 = arith.constant 0 : index
    %412 = vector.load %arg2[%411, %c0_114] : memref<64x1xf32, #tpu.memory_space<vmem>>, vector<8x1xf32>
    %cst_115 = arith.constant 5.000000e-01 : f32
    %413 = vector.broadcast %cst_115 : f32 to vector<8x1xf32>
    %414 = arith.cmpf ogt, %412, %413 : vector<8x1xf32>
    %415 = vector.broadcast %cst_109 : f32 to vector<8x1xf32>
    %416 = arith.select %414, %415, %410 : vector<8x1xi1>, vector<8x1xf32>
    %417 = arith.maximumf %398, %416 : vector<8x1xf32>
    %418 = arith.subf %398, %417 : vector<8x1xf32>
    %419 = math.exp %418 : vector<8x1xf32>
    %420 = arith.subf %416, %417 : vector<8x1xf32>
    %421 = math.exp %420 : vector<8x1xf32>
    %422 = arith.index_cast %402 : i32 to index
    %c0_116 = arith.constant 0 : index
    %423 = vector.load %arg15[%422, %c0_116] : memref<64x32xf32, #tpu.memory_space<vmem>>, vector<8x32xf32>
    %424 = arith.mulf %419, %399 : vector<8x1xf32>
    %425 = arith.addf %424, %421 : vector<8x1xf32>
    %426 = vector.broadcast %419 : vector<8x1xf32> to vector<8x32xf32>
    %427 = arith.mulf %426, %400 : vector<8x32xf32>
    %428 = vector.broadcast %421 : vector<8x1xf32> to vector<8x32xf32>
    %429 = arith.mulf %428, %423 : vector<8x32xf32>
    %430 = arith.addf %427, %429 : vector<8x32xf32>
    %c1_i32_117 = arith.constant 1 : i32
    %c8_i32_118 = arith.constant 8 : i32
    %431 = arith.muli %c1_i32_117, %c8_i32_118 : i32
    %432 = tpu.assume_multiple %431, 8 : i32
    %433 = arith.index_cast %432 : i32 to index
    %c0_119 = arith.constant 0 : index
    %434 = vector.load %arg16[%433, %c0_119] : memref<64x32xf32, #tpu.memory_space<vmem>>, vector<8x32xf32>
    %435 = arith.addf %434, %391 : vector<8x32xf32>
    %436 = math.tanh %435 : vector<8x32xf32>
    %437 = vector.broadcast %397 : vector<1x32xf32> to vector<8x32xf32>
    %438 = arith.mulf %436, %437 : vector<8x32xf32>
    %cst_120 = arith.constant dense<0.000000e+00> : vector<8xf32>
    %439 = vector.multi_reduction <add>, %438, %cst_120 [1] : vector<8x32xf32> to vector<8xf32>
    %440 = vector.shape_cast %439 : vector<8xf32> to vector<8x1xf32>
    %441 = arith.index_cast %432 : i32 to index
    %c0_121 = arith.constant 0 : index
    %442 = vector.load %arg2[%441, %c0_121] : memref<64x1xf32, #tpu.memory_space<vmem>>, vector<8x1xf32>
    %cst_122 = arith.constant 5.000000e-01 : f32
    %443 = vector.broadcast %cst_122 : f32 to vector<8x1xf32>
    %444 = arith.cmpf ogt, %442, %443 : vector<8x1xf32>
    %445 = vector.broadcast %cst_109 : f32 to vector<8x1xf32>
    %446 = arith.select %444, %445, %440 : vector<8x1xi1>, vector<8x1xf32>
    %447 = arith.maximumf %417, %446 : vector<8x1xf32>
    %448 = arith.subf %417, %447 : vector<8x1xf32>
    %449 = math.exp %448 : vector<8x1xf32>
    %450 = arith.subf %446, %447 : vector<8x1xf32>
    %451 = math.exp %450 : vector<8x1xf32>
    %452 = arith.index_cast %432 : i32 to index
    %c0_123 = arith.constant 0 : index
    %453 = vector.load %arg15[%452, %c0_123] : memref<64x32xf32, #tpu.memory_space<vmem>>, vector<8x32xf32>
    %454 = arith.mulf %449, %425 : vector<8x1xf32>
    %455 = arith.addf %454, %451 : vector<8x1xf32>
    %456 = vector.broadcast %449 : vector<8x1xf32> to vector<8x32xf32>
    %457 = arith.mulf %456, %430 : vector<8x32xf32>
    %458 = vector.broadcast %451 : vector<8x1xf32> to vector<8x32xf32>
    %459 = arith.mulf %458, %453 : vector<8x32xf32>
    %460 = arith.addf %457, %459 : vector<8x32xf32>
    %c2_i32_124 = arith.constant 2 : i32
    %c8_i32_125 = arith.constant 8 : i32
    %461 = arith.muli %c2_i32_124, %c8_i32_125 : i32
    %462 = tpu.assume_multiple %461, 8 : i32
    %463 = arith.index_cast %462 : i32 to index
    %c0_126 = arith.constant 0 : index
    %464 = vector.load %arg16[%463, %c0_126] : memref<64x32xf32, #tpu.memory_space<vmem>>, vector<8x32xf32>
    %465 = arith.addf %464, %391 : vector<8x32xf32>
    %466 = math.tanh %465 : vector<8x32xf32>
    %467 = vector.broadcast %397 : vector<1x32xf32> to vector<8x32xf32>
    %468 = arith.mulf %466, %467 : vector<8x32xf32>
    %cst_127 = arith.constant dense<0.000000e+00> : vector<8xf32>
    %469 = vector.multi_reduction <add>, %468, %cst_127 [1] : vector<8x32xf32> to vector<8xf32>
    %470 = vector.shape_cast %469 : vector<8xf32> to vector<8x1xf32>
    %471 = arith.index_cast %462 : i32 to index
    %c0_128 = arith.constant 0 : index
    %472 = vector.load %arg2[%471, %c0_128] : memref<64x1xf32, #tpu.memory_space<vmem>>, vector<8x1xf32>
    %cst_129 = arith.constant 5.000000e-01 : f32
    %473 = vector.broadcast %cst_129 : f32 to vector<8x1xf32>
    %474 = arith.cmpf ogt, %472, %473 : vector<8x1xf32>
    %475 = vector.broadcast %cst_109 : f32 to vector<8x1xf32>
    %476 = arith.select %474, %475, %470 : vector<8x1xi1>, vector<8x1xf32>
    %477 = arith.maximumf %447, %476 : vector<8x1xf32>
    %478 = arith.subf %447, %477 : vector<8x1xf32>
    %479 = math.exp %478 : vector<8x1xf32>
    %480 = arith.subf %476, %477 : vector<8x1xf32>
    %481 = math.exp %480 : vector<8x1xf32>
    %482 = arith.index_cast %462 : i32 to index
    %c0_130 = arith.constant 0 : index
    %483 = vector.load %arg15[%482, %c0_130] : memref<64x32xf32, #tpu.memory_space<vmem>>, vector<8x32xf32>
    %484 = arith.mulf %479, %455 : vector<8x1xf32>
    %485 = arith.addf %484, %481 : vector<8x1xf32>
    %486 = vector.broadcast %479 : vector<8x1xf32> to vector<8x32xf32>
    %487 = arith.mulf %486, %460 : vector<8x32xf32>
    %488 = vector.broadcast %481 : vector<8x1xf32> to vector<8x32xf32>
    %489 = arith.mulf %488, %483 : vector<8x32xf32>
    %490 = arith.addf %487, %489 : vector<8x32xf32>
    %c3_i32_131 = arith.constant 3 : i32
    %c8_i32_132 = arith.constant 8 : i32
    %491 = arith.muli %c3_i32_131, %c8_i32_132 : i32
    %492 = tpu.assume_multiple %491, 8 : i32
    %493 = arith.index_cast %492 : i32 to index
    %c0_133 = arith.constant 0 : index
    %494 = vector.load %arg16[%493, %c0_133] : memref<64x32xf32, #tpu.memory_space<vmem>>, vector<8x32xf32>
    %495 = arith.addf %494, %391 : vector<8x32xf32>
    %496 = math.tanh %495 : vector<8x32xf32>
    %497 = vector.broadcast %397 : vector<1x32xf32> to vector<8x32xf32>
    %498 = arith.mulf %496, %497 : vector<8x32xf32>
    %cst_134 = arith.constant dense<0.000000e+00> : vector<8xf32>
    %499 = vector.multi_reduction <add>, %498, %cst_134 [1] : vector<8x32xf32> to vector<8xf32>
    %500 = vector.shape_cast %499 : vector<8xf32> to vector<8x1xf32>
    %501 = arith.index_cast %492 : i32 to index
    %c0_135 = arith.constant 0 : index
    %502 = vector.load %arg2[%501, %c0_135] : memref<64x1xf32, #tpu.memory_space<vmem>>, vector<8x1xf32>
    %cst_136 = arith.constant 5.000000e-01 : f32
    %503 = vector.broadcast %cst_136 : f32 to vector<8x1xf32>
    %504 = arith.cmpf ogt, %502, %503 : vector<8x1xf32>
    %505 = vector.broadcast %cst_109 : f32 to vector<8x1xf32>
    %506 = arith.select %504, %505, %500 : vector<8x1xi1>, vector<8x1xf32>
    %507 = arith.maximumf %477, %506 : vector<8x1xf32>
    %508 = arith.subf %477, %507 : vector<8x1xf32>
    %509 = math.exp %508 : vector<8x1xf32>
    %510 = arith.subf %506, %507 : vector<8x1xf32>
    %511 = math.exp %510 : vector<8x1xf32>
    %512 = arith.index_cast %492 : i32 to index
    %c0_137 = arith.constant 0 : index
    %513 = vector.load %arg15[%512, %c0_137] : memref<64x32xf32, #tpu.memory_space<vmem>>, vector<8x32xf32>
    %514 = arith.mulf %509, %485 : vector<8x1xf32>
    %515 = arith.addf %514, %511 : vector<8x1xf32>
    %516 = vector.broadcast %509 : vector<8x1xf32> to vector<8x32xf32>
    %517 = arith.mulf %516, %490 : vector<8x32xf32>
    %518 = vector.broadcast %511 : vector<8x1xf32> to vector<8x32xf32>
    %519 = arith.mulf %518, %513 : vector<8x32xf32>
    %520 = arith.addf %517, %519 : vector<8x32xf32>
    %c4_i32_138 = arith.constant 4 : i32
    %c8_i32_139 = arith.constant 8 : i32
    %521 = arith.muli %c4_i32_138, %c8_i32_139 : i32
    %522 = tpu.assume_multiple %521, 8 : i32
    %523 = arith.index_cast %522 : i32 to index
    %c0_140 = arith.constant 0 : index
    %524 = vector.load %arg16[%523, %c0_140] : memref<64x32xf32, #tpu.memory_space<vmem>>, vector<8x32xf32>
    %525 = arith.addf %524, %391 : vector<8x32xf32>
    %526 = math.tanh %525 : vector<8x32xf32>
    %527 = vector.broadcast %397 : vector<1x32xf32> to vector<8x32xf32>
    %528 = arith.mulf %526, %527 : vector<8x32xf32>
    %cst_141 = arith.constant dense<0.000000e+00> : vector<8xf32>
    %529 = vector.multi_reduction <add>, %528, %cst_141 [1] : vector<8x32xf32> to vector<8xf32>
    %530 = vector.shape_cast %529 : vector<8xf32> to vector<8x1xf32>
    %531 = arith.index_cast %522 : i32 to index
    %c0_142 = arith.constant 0 : index
    %532 = vector.load %arg2[%531, %c0_142] : memref<64x1xf32, #tpu.memory_space<vmem>>, vector<8x1xf32>
    %cst_143 = arith.constant 5.000000e-01 : f32
    %533 = vector.broadcast %cst_143 : f32 to vector<8x1xf32>
    %534 = arith.cmpf ogt, %532, %533 : vector<8x1xf32>
    %535 = vector.broadcast %cst_109 : f32 to vector<8x1xf32>
    %536 = arith.select %534, %535, %530 : vector<8x1xi1>, vector<8x1xf32>
    %537 = arith.maximumf %507, %536 : vector<8x1xf32>
    %538 = arith.subf %507, %537 : vector<8x1xf32>
    %539 = math.exp %538 : vector<8x1xf32>
    %540 = arith.subf %536, %537 : vector<8x1xf32>
    %541 = math.exp %540 : vector<8x1xf32>
    %542 = arith.index_cast %522 : i32 to index
    %c0_144 = arith.constant 0 : index
    %543 = vector.load %arg15[%542, %c0_144] : memref<64x32xf32, #tpu.memory_space<vmem>>, vector<8x32xf32>
    %544 = arith.mulf %539, %515 : vector<8x1xf32>
    %545 = arith.addf %544, %541 : vector<8x1xf32>
    %546 = vector.broadcast %539 : vector<8x1xf32> to vector<8x32xf32>
    %547 = arith.mulf %546, %520 : vector<8x32xf32>
    %548 = vector.broadcast %541 : vector<8x1xf32> to vector<8x32xf32>
    %549 = arith.mulf %548, %543 : vector<8x32xf32>
    %550 = arith.addf %547, %549 : vector<8x32xf32>
    %c5_i32_145 = arith.constant 5 : i32
    %c8_i32_146 = arith.constant 8 : i32
    %551 = arith.muli %c5_i32_145, %c8_i32_146 : i32
    %552 = tpu.assume_multiple %551, 8 : i32
    %553 = arith.index_cast %552 : i32 to index
    %c0_147 = arith.constant 0 : index
    %554 = vector.load %arg16[%553, %c0_147] : memref<64x32xf32, #tpu.memory_space<vmem>>, vector<8x32xf32>
    %555 = arith.addf %554, %391 : vector<8x32xf32>
    %556 = math.tanh %555 : vector<8x32xf32>
    %557 = vector.broadcast %397 : vector<1x32xf32> to vector<8x32xf32>
    %558 = arith.mulf %556, %557 : vector<8x32xf32>
    %cst_148 = arith.constant dense<0.000000e+00> : vector<8xf32>
    %559 = vector.multi_reduction <add>, %558, %cst_148 [1] : vector<8x32xf32> to vector<8xf32>
    %560 = vector.shape_cast %559 : vector<8xf32> to vector<8x1xf32>
    %561 = arith.index_cast %552 : i32 to index
    %c0_149 = arith.constant 0 : index
    %562 = vector.load %arg2[%561, %c0_149] : memref<64x1xf32, #tpu.memory_space<vmem>>, vector<8x1xf32>
    %cst_150 = arith.constant 5.000000e-01 : f32
    %563 = vector.broadcast %cst_150 : f32 to vector<8x1xf32>
    %564 = arith.cmpf ogt, %562, %563 : vector<8x1xf32>
    %565 = vector.broadcast %cst_109 : f32 to vector<8x1xf32>
    %566 = arith.select %564, %565, %560 : vector<8x1xi1>, vector<8x1xf32>
    %567 = arith.maximumf %537, %566 : vector<8x1xf32>
    %568 = arith.subf %537, %567 : vector<8x1xf32>
    %569 = math.exp %568 : vector<8x1xf32>
    %570 = arith.subf %566, %567 : vector<8x1xf32>
    %571 = math.exp %570 : vector<8x1xf32>
    %572 = arith.index_cast %552 : i32 to index
    %c0_151 = arith.constant 0 : index
    %573 = vector.load %arg15[%572, %c0_151] : memref<64x32xf32, #tpu.memory_space<vmem>>, vector<8x32xf32>
    %574 = arith.mulf %569, %545 : vector<8x1xf32>
    %575 = arith.addf %574, %571 : vector<8x1xf32>
    %576 = vector.broadcast %569 : vector<8x1xf32> to vector<8x32xf32>
    %577 = arith.mulf %576, %550 : vector<8x32xf32>
    %578 = vector.broadcast %571 : vector<8x1xf32> to vector<8x32xf32>
    %579 = arith.mulf %578, %573 : vector<8x32xf32>
    %580 = arith.addf %577, %579 : vector<8x32xf32>
    %c6_i32_152 = arith.constant 6 : i32
    %c8_i32_153 = arith.constant 8 : i32
    %581 = arith.muli %c6_i32_152, %c8_i32_153 : i32
    %582 = tpu.assume_multiple %581, 8 : i32
    %583 = arith.index_cast %582 : i32 to index
    %c0_154 = arith.constant 0 : index
    %584 = vector.load %arg16[%583, %c0_154] : memref<64x32xf32, #tpu.memory_space<vmem>>, vector<8x32xf32>
    %585 = arith.addf %584, %391 : vector<8x32xf32>
    %586 = math.tanh %585 : vector<8x32xf32>
    %587 = vector.broadcast %397 : vector<1x32xf32> to vector<8x32xf32>
    %588 = arith.mulf %586, %587 : vector<8x32xf32>
    %cst_155 = arith.constant dense<0.000000e+00> : vector<8xf32>
    %589 = vector.multi_reduction <add>, %588, %cst_155 [1] : vector<8x32xf32> to vector<8xf32>
    %590 = vector.shape_cast %589 : vector<8xf32> to vector<8x1xf32>
    %591 = arith.index_cast %582 : i32 to index
    %c0_156 = arith.constant 0 : index
    %592 = vector.load %arg2[%591, %c0_156] : memref<64x1xf32, #tpu.memory_space<vmem>>, vector<8x1xf32>
    %cst_157 = arith.constant 5.000000e-01 : f32
    %593 = vector.broadcast %cst_157 : f32 to vector<8x1xf32>
    %594 = arith.cmpf ogt, %592, %593 : vector<8x1xf32>
    %595 = vector.broadcast %cst_109 : f32 to vector<8x1xf32>
    %596 = arith.select %594, %595, %590 : vector<8x1xi1>, vector<8x1xf32>
    %597 = arith.maximumf %567, %596 : vector<8x1xf32>
    %598 = arith.subf %567, %597 : vector<8x1xf32>
    %599 = math.exp %598 : vector<8x1xf32>
    %600 = arith.subf %596, %597 : vector<8x1xf32>
    %601 = math.exp %600 : vector<8x1xf32>
    %602 = arith.index_cast %582 : i32 to index
    %c0_158 = arith.constant 0 : index
    %603 = vector.load %arg15[%602, %c0_158] : memref<64x32xf32, #tpu.memory_space<vmem>>, vector<8x32xf32>
    %604 = arith.mulf %599, %575 : vector<8x1xf32>
    %605 = arith.addf %604, %601 : vector<8x1xf32>
    %606 = vector.broadcast %599 : vector<8x1xf32> to vector<8x32xf32>
    %607 = arith.mulf %606, %580 : vector<8x32xf32>
    %608 = vector.broadcast %601 : vector<8x1xf32> to vector<8x32xf32>
    %609 = arith.mulf %608, %603 : vector<8x32xf32>
    %610 = arith.addf %607, %609 : vector<8x32xf32>
    %c7_i32_159 = arith.constant 7 : i32
    %c8_i32_160 = arith.constant 8 : i32
    %611 = arith.muli %c7_i32_159, %c8_i32_160 : i32
    %612 = tpu.assume_multiple %611, 8 : i32
    %613 = arith.index_cast %612 : i32 to index
    %c0_161 = arith.constant 0 : index
    %614 = vector.load %arg16[%613, %c0_161] : memref<64x32xf32, #tpu.memory_space<vmem>>, vector<8x32xf32>
    %615 = arith.addf %614, %391 : vector<8x32xf32>
    %616 = math.tanh %615 : vector<8x32xf32>
    %617 = vector.broadcast %397 : vector<1x32xf32> to vector<8x32xf32>
    %618 = arith.mulf %616, %617 : vector<8x32xf32>
    %cst_162 = arith.constant dense<0.000000e+00> : vector<8xf32>
    %619 = vector.multi_reduction <add>, %618, %cst_162 [1] : vector<8x32xf32> to vector<8xf32>
    %620 = vector.shape_cast %619 : vector<8xf32> to vector<8x1xf32>
    %621 = arith.index_cast %612 : i32 to index
    %c0_163 = arith.constant 0 : index
    %622 = vector.load %arg2[%621, %c0_163] : memref<64x1xf32, #tpu.memory_space<vmem>>, vector<8x1xf32>
    %cst_164 = arith.constant 5.000000e-01 : f32
    %623 = vector.broadcast %cst_164 : f32 to vector<8x1xf32>
    %624 = arith.cmpf ogt, %622, %623 : vector<8x1xf32>
    %625 = vector.broadcast %cst_109 : f32 to vector<8x1xf32>
    %626 = arith.select %624, %625, %620 : vector<8x1xi1>, vector<8x1xf32>
    %627 = arith.maximumf %597, %626 : vector<8x1xf32>
    %628 = arith.subf %597, %627 : vector<8x1xf32>
    %629 = math.exp %628 : vector<8x1xf32>
    %630 = arith.subf %626, %627 : vector<8x1xf32>
    %631 = math.exp %630 : vector<8x1xf32>
    %632 = arith.index_cast %612 : i32 to index
    %c0_165 = arith.constant 0 : index
    %633 = vector.load %arg15[%632, %c0_165] : memref<64x32xf32, #tpu.memory_space<vmem>>, vector<8x32xf32>
    %634 = arith.mulf %629, %605 : vector<8x1xf32>
    %635 = arith.addf %634, %631 : vector<8x1xf32>
    %636 = vector.broadcast %629 : vector<8x1xf32> to vector<8x32xf32>
    %637 = arith.mulf %636, %610 : vector<8x32xf32>
    %638 = vector.broadcast %631 : vector<8x1xf32> to vector<8x32xf32>
    %639 = arith.mulf %638, %633 : vector<8x32xf32>
    %640 = arith.addf %637, %639 : vector<8x32xf32>
    %c8_i32_166 = arith.constant 8 : i32
    %cst_167 = arith.constant 1.000000e-30 : f32
    %641 = vector.broadcast %cst_167 : f32 to vector<8x1xf32>
    %642 = arith.maximumf %635, %641 : vector<8x1xf32>
    %643 = tpu.reciprocal %642 {approx = true} : vector<8x1xf32> -> vector<8x1xf32>
    %644 = vector.broadcast %643 : vector<8x1xf32> to vector<8x32xf32>
    %645 = arith.mulf %640, %644 : vector<8x32xf32>
    %646 = arith.truncf %645 : vector<8x32xf32> to vector<8x32xbf16>
    %c0_168 = arith.constant 0 : index
    %c0_169 = arith.constant 0 : index
    %647 = vector.load %arg11[%c0_168, %c0_169] : memref<32x128xbf16, #tpu.memory_space<vmem>>, vector<32x128xbf16>
    %cst_170 = arith.constant dense<0.000000e+00> : vector<8x128xf32>
    %648 = tpu.matmul %646, %647, %cst_170 {dimension_numbers = #tpu.dot_dimension_numbers<[1], [0], [0], [1], [0, 0, 1, 1], [], []>} : vector<8x32xbf16>, vector<32x128xbf16>, vector<8x128xf32> -> vector<8x128xf32>
    %c0_171 = arith.constant 0 : index
    %c0_172 = arith.constant 0 : index
    %649 = vector.load %arg12[%c0_171, %c0_172] : memref<1x128xf32, #tpu.memory_space<vmem>>, vector<1x128xf32>
    %650 = vector.broadcast %649 : vector<1x128xf32> to vector<8x128xf32>
    %651 = arith.addf %648, %650 : vector<8x128xf32>
    %c0_173 = arith.constant 0 : index
    %c0_174 = arith.constant 0 : index
    %652 = vector.load %arg13[%c0_173, %c0_174] : memref<8x128xf32, #tpu.memory_space<vmem>>, vector<8x128xf32>
    tpu.vector_store %arg13[%c0_173, %c0_174], %651 {strides = array<i32>} : memref<8x128xf32, #tpu.memory_space<vmem>>, vector<8x128xf32>,
    return
  }
  func.func @transform_0(%arg0: i32) -> (i32, i32) {
    %c0_i32 = arith.constant 0 : i32
    %c0_i32_0 = arith.constant 0 : i32
    return %arg0, %c0_i32 : i32, i32
  }
  func.func @transform_1(%arg0: i32) -> (i32, i32) {
    %c0_i32 = arith.constant 0 : i32
    %c0_i32_0 = arith.constant 0 : i32
    return %arg0, %c0_i32 : i32, i32
  }
  func.func @transform_2(%arg0: i32) -> (i32, i32) {
    %c0_i32 = arith.constant 0 : i32
    %c0_i32_0 = arith.constant 0 : i32
    %c0_i32_1 = arith.constant 0 : i32
    return %c0_i32, %c0_i32_0 : i32, i32
  }
  func.func @transform_3(%arg0: i32) -> (i32, i32) {
    %c0_i32 = arith.constant 0 : i32
    %c0_i32_0 = arith.constant 0 : i32
    %c0_i32_1 = arith.constant 0 : i32
    return %c0_i32, %c0_i32_0 : i32, i32
  }
  func.func @transform_4(%arg0: i32) -> (i32, i32) {
    %c0_i32 = arith.constant 0 : i32
    %c0_i32_0 = arith.constant 0 : i32
    %c0_i32_1 = arith.constant 0 : i32
    return %c0_i32, %c0_i32_0 : i32, i32
  }
  func.func @transform_5(%arg0: i32) -> (i32, i32) {
    %c0_i32 = arith.constant 0 : i32
    %c0_i32_0 = arith.constant 0 : i32
    %c0_i32_1 = arith.constant 0 : i32
    return %c0_i32, %c0_i32_0 : i32, i32
  }
  func.func @transform_6(%arg0: i32) -> (i32, i32) {
    %c0_i32 = arith.constant 0 : i32
    %c0_i32_0 = arith.constant 0 : i32
    %c0_i32_1 = arith.constant 0 : i32
    return %c0_i32, %c0_i32_0 : i32, i32
  }
  func.func @transform_7(%arg0: i32) -> (i32, i32) {
    %c0_i32 = arith.constant 0 : i32
    %c0_i32_0 = arith.constant 0 : i32
    %c0_i32_1 = arith.constant 0 : i32
    return %c0_i32, %c0_i32_0 : i32, i32
  }
  func.func @transform_8(%arg0: i32) -> (i32, i32) {
    %c0_i32 = arith.constant 0 : i32
    %c0_i32_0 = arith.constant 0 : i32
    %c0_i32_1 = arith.constant 0 : i32
    return %c0_i32, %c0_i32_0 : i32, i32
  }
  func.func @transform_9(%arg0: i32) -> (i32, i32) {
    %c0_i32 = arith.constant 0 : i32
    %c0_i32_0 = arith.constant 0 : i32
    %c0_i32_1 = arith.constant 0 : i32
    return %c0_i32, %c0_i32_0 : i32, i32
  }
  func.func @transform_10(%arg0: i32) -> (i32, i32) {
    %c0_i32 = arith.constant 0 : i32
    %c0_i32_0 = arith.constant 0 : i32
    %c0_i32_1 = arith.constant 0 : i32
    return %c0_i32, %c0_i32_0 : i32, i32
  }
  func.func @transform_11(%arg0: i32) -> (i32, i32) {
    %c0_i32 = arith.constant 0 : i32
    %c0_i32_0 = arith.constant 0 : i32
    %c0_i32_1 = arith.constant 0 : i32
    return %c0_i32, %c0_i32_0 : i32, i32
  }
  func.func @transform_12(%arg0: i32) -> (i32, i32) {
    %c0_i32 = arith.constant 0 : i32
    %c0_i32_0 = arith.constant 0 : i32
    return %arg0, %c0_i32 : i32, i32
  }
}

</mosaic_0001>

<llo_original>
// kernel: tpu_custom_call.1
$region0: #{tpu_custom_call.1}
  #allocation0 [shape = 'u32[]', space=smem, size = 0x4, offset = 0x4, fixed_abs, tag = 'smem constant byte address 0x4 - core index']
  #allocation1 [shape = 'u32[144,128]{1,0:T(1,128)}', space=vmem, size = 0x12000, scoped, tag = 'internal scratch']
  #allocation2 [shape = 'f32[64,96]{1,0:T(8,128)}', space=vmem, size = 0x8000, scoped, tag = 'scratch operand']
  #allocation3 [shape = 'f32[64,32]{1,0:T(8,128)}', space=vmem, size = 0x8000, scoped, tag = 'scratch operand']
  #allocation4 [shape = 'f32[64,32]{1,0:T(8,128)}', space=vmem, size = 0x8000, scoped, tag = 'scratch operand']
  %s0 = inlined_call_operand.vmem [shape: bf16[128,16], index: 0, kind: input, shape index: {}]
  %s1 = inlined_call_operand.vmem [shape: f32[128,1], index: 1, kind: input, shape index: {}]
  %s2 = inlined_call_operand.vmem [shape: bf16[16,96], index: 2, kind: input, shape index: {}]
  %s3 = inlined_call_operand.vmem [shape: f32[1,96], index: 3, kind: input, shape index: {}]
  %s4 = inlined_call_operand.vmem [shape: bf16[32,96], index: 4, kind: input, shape index: {}]
  %s5 = inlined_call_operand.vmem [shape: f32[1,32], index: 5, kind: input, shape index: {}]
  %s6 = inlined_call_operand.vmem [shape: bf16[32,32], index: 6, kind: input, shape index: {}]
  %s7 = inlined_call_operand.vmem [shape: bf16[32,32], index: 7, kind: input, shape index: {}]
  %s8 = inlined_call_operand.vmem [shape: f32[1,32], index: 8, kind: input, shape index: {}]
  %s9 = inlined_call_operand.vmem [shape: f32[1,32], index: 9, kind: input, shape index: {}]
  %s10 = inlined_call_operand.vmem [shape: bf16[32,128], index: 10, kind: input, shape index: {}]
  %s11 = inlined_call_operand.vmem [shape: f32[1,128], index: 11, kind: input, shape index: {}]
  %s12 = inlined_call_operand.hbm [shape: f32[16,128], index: 12, kind: output, shape index: {}]
  %s13 = sld [smem:[#allocation0]]
  $region81: #{tpu_custom_call.1} parent=0
    _
  %s15 = ssub.s32 1, %s13
  %s16 = scalar_select 0, %s15, %s13
  $region1: #{tpu_custom_call.1} parent=0
    #allocation5 [shape = 'u8[8192]{0}', space=vmem, size = 0x2000, scoped, tag = 'output window, operand 0']
    #allocation6 [shape = 's32[2]{0}', space=sflag, size = 0x8, scoped, tag = 'scoped memory for tpu_custom_call.1']
    %17 = vsyncpa [#allocation6], 0
    %s18 = scalar_lea.sflag [#allocation6], 1
    %19 = vsyncpa %s18, 0
    loop: start=0, step=1, limit=4
    $region2: #{tpu_custom_call.1} parent=1 // loop_pre_header
      _
    $region3: #{tpu_custom_call.1} parent=1 // loop_header
      %s21 = sphi 0, %s25
      %p22 = scmp.ge.s32.totalorder %s21, 4
      %s31 = sphi 0, %s33
      %s34 = sphi 0, %s31
      %s35 = sphi 0, %s34
      %s51 = sphi 0, %s35
      %s57 = sphi 0, %s59
      %s60 = sphi 0, %s57
      %s61 = sphi 0, %s60
      %s77 = sphi 0, %s61
      %s81 = sphi 0, %s81
      %s83 = sphi 0, %s81
      %s84 = sphi 0, %s83
      %s98 = sphi 0, %s84
      %s102 = sphi 0, %s102
      %s104 = sphi 0, %s102
      %s105 = sphi 0, %s104
      %s119 = sphi 0, %s105
      %s123 = sphi 0, %s123
      %s125 = sphi 0, %s123
      %s126 = sphi 0, %s125
      %s140 = sphi 0, %s126
      %s144 = sphi 0, %s144
      %s146 = sphi 0, %s144
      %s147 = sphi 0, %s146
      %s161 = sphi 0, %s147
      %s165 = sphi 0, %s165
      %s167 = sphi 0, %s165
      %s168 = sphi 0, %s167
      %s182 = sphi 0, %s168
      %s186 = sphi 0, %s186
      %s188 = sphi 0, %s186
      %s189 = sphi 0, %s188
      %s203 = sphi 0, %s189
      %s207 = sphi 0, %s207
      %s209 = sphi 0, %s207
      %s210 = sphi 0, %s209
      %s224 = sphi 0, %s210
      %s228 = sphi 0, %s228
      %s230 = sphi 0, %s228
      %s231 = sphi 0, %s230
      %s245 = sphi 0, %s231
      %s249 = sphi 0, %s249
      %s251 = sphi 0, %s249
      %s252 = sphi 0, %s251
      %s266 = sphi 0, %s252
      %s270 = sphi 0, %s270
      %s272 = sphi 0, %s270
      %s273 = sphi 0, %s272
      %s287 = sphi 0, %s273
      %s293 = sphi 0, %s295
      %s296 = sphi 0, %s293
      %s297 = sphi 0, %s296
      %s313 = sphi 0, %s297
    $region4: #{tpu_custom_call.1} parent=1 // loop_header_branch
      %24 = sbr.rel (%p22) target = $region8
    $region5: #{tpu_custom_call.1} parent=1 // loop_body
      %s26 = ssub.s32 %s21, 1
      %s27 = ssub.s32 %s21, 2
      %s28 = sadd.s32 %s21, 1
      %s29 = ssub.s32 %s21, %s28
      %p30 = scmp.eq.s32.totalorder %s29, 0
      %s32 = sadd.s32 %s31, 1
      %s33 = scalar_select %p30, %s31, %s32
      %p36 = pneg %p30
      %p37 = scmp.eq.s32.totalorder %s21, 1
      %p38 = por %p36, %p37
      %p39 = scmp.ne.s32.totalorder %s31, %s34
      %p40 = scmp.eq.s32.totalorder %s21, 0
      %p41 = por %p39, %p40
      %p42 = scmp.ne.s32.totalorder %s31, %s34
      %p43 = scmp.eq.s32.totalorder %s26, 1
      %p44 = por %p42, %p43
      %p45 = scmp.ne.s32.totalorder %s34, %s35
      %p46 = scmp.eq.s32.totalorder %s26, 0
      %p47 = por %p45, %p46
      %p48 = scmp.ne.s32.totalorder %s34, %s35
      %p49 = scmp.eq.s32.totalorder %s27, 1
      %p50 = por %p48, %p49
      %p52 = scmp.ne.s32.totalorder %s35, %s51
      %p53 = scmp.eq.s32.totalorder %s27, 0
      %p54 = por %p52, %p53
      %s55 = ssub.s32 %s21, %s28
      %p56 = scmp.eq.s32.totalorder %s55, 0
      %s58 = sadd.s32 %s57, 1
      %s59 = scalar_select %p56, %s57, %s58
      %p62 = pneg %p56
      %p63 = scmp.eq.s32.totalorder %s21, 1
      %p64 = por %p62, %p63
      %p65 = scmp.ne.s32.totalorder %s57, %s60
      %p66 = scmp.eq.s32.totalorder %s21, 0
      %p67 = por %p65, %p66
      %p68 = scmp.ne.s32.totalorder %s57, %s60
      %p69 = scmp.eq.s32.totalorder %s26, 1
      %p70 = por %p68, %p69
      %p71 = scmp.ne.s32.totalorder %s60, %s61
      %p72 = scmp.eq.s32.totalorder %s26, 0
      %p73 = por %p71, %p72
      %p74 = scmp.ne.s32.totalorder %s60, %s61
      %p75 = scmp.eq.s32.totalorder %s27, 1
      %p76 = por %p74, %p75
      %p78 = scmp.ne.s32.totalorder %s61, %s77
      %p79 = scmp.eq.s32.totalorder %s27, 0
      %p80 = por %p78, %p79
      %s82 = sadd.s32 %s81, 1
      %p85 = scmp.eq.s32.totalorder %s21, 1
      %p86 = scmp.ne.s32.totalorder %s81, %s83
      %p87 = scmp.eq.s32.totalorder %s21, 0
      %p88 = por %p86, %p87
      %p89 = scmp.ne.s32.totalorder %s81, %s83
      %p90 = scmp.eq.s32.totalorder %s26, 1
      %p91 = por %p89, %p90
      %p92 = scmp.ne.s32.totalorder %s83, %s84
      %p93 = scmp.eq.s32.totalorder %s26, 0
      %p94 = por %p92, %p93
      %p95 = scmp.ne.s32.totalorder %s83, %s84
      %p96 = scmp.eq.s32.totalorder %s27, 1
      %p97 = por %p95, %p96
      %p99 = scmp.ne.s32.totalorder %s84, %s98
      %p100 = scmp.eq.s32.totalorder %s27, 0
      %p101 = por %p99, %p100
      %s103 = sadd.s32 %s102, 1
      %p106 = scmp.eq.s32.totalorder %s21, 1
      %p107 = scmp.ne.s32.totalorder %s102, %s104
      %p108 = scmp.eq.s32.totalorder %s21, 0
      %p109 = por %p107, %p108
      %p110 = scmp.ne.s32.totalorder %s102, %s104
      %p111 = scmp.eq.s32.totalorder %s26, 1
      %p112 = por %p110, %p111
      %p113 = scmp.ne.s32.totalorder %s104, %s105
      %p114 = scmp.eq.s32.totalorder %s26, 0
      %p115 = por %p113, %p114
      %p116 = scmp.ne.s32.totalorder %s104, %s105
      %p117 = scmp.eq.s32.totalorder %s27, 1
      %p118 = por %p116, %p117
      %p120 = scmp.ne.s32.totalorder %s105, %s119
      %p121 = scmp.eq.s32.totalorder %s27, 0
      %p122 = por %p120, %p121
      %s124 = sadd.s32 %s123, 1
      %p127 = scmp.eq.s32.totalorder %s21, 1
      %p128 = scmp.ne.s32.totalorder %s123, %s125
      %p129 = scmp.eq.s32.totalorder %s21, 0
      %p130 = por %p128, %p129
      %p131 = scmp.ne.s32.totalorder %s123, %s125
      %p132 = scmp.eq.s32.totalorder %s26, 1
      %p133 = por %p131, %p132
      %p134 = scmp.ne.s32.totalorder %s125, %s126
      %p135 = scmp.eq.s32.totalorder %s26, 0
      %p136 = por %p134, %p135
      %p137 = scmp.ne.s32.totalorder %s125, %s126
      %p138 = scmp.eq.s32.totalorder %s27, 1
      %p139 = por %p137, %p138
      %p141 = scmp.ne.s32.totalorder %s126, %s140
      %p142 = scmp.eq.s32.totalorder %s27, 0
      %p143 = por %p141, %p142
      %s145 = sadd.s32 %s144, 1
      %p148 = scmp.eq.s32.totalorder %s21, 1
      %p149 = scmp.ne.s32.totalorder %s144, %s146
      %p150 = scmp.eq.s32.totalorder %s21, 0
      %p151 = por %p149, %p150
      %p152 = scmp.ne.s32.totalorder %s144, %s146
      %p153 = scmp.eq.s32.totalorder %s26, 1
      %p154 = por %p152, %p153
      %p155 = scmp.ne.s32.totalorder %s146, %s147
      %p156 = scmp.eq.s32.totalorder %s26, 0
      %p157 = por %p155, %p156
      %p158 = scmp.ne.s32.totalorder %s146, %s147
      %p159 = scmp.eq.s32.totalorder %s27, 1
      %p160 = por %p158, %p159
      %p162 = scmp.ne.s32.totalorder %s147, %s161
      %p163 = scmp.eq.s32.totalorder %s27, 0
      %p164 = por %p162, %p163
      %s166 = sadd.s32 %s165, 1
      %p169 = scmp.eq.s32.totalorder %s21, 1
      %p170 = scmp.ne.s32.totalorder %s165, %s167
      %p171 = scmp.eq.s32.totalorder %s21, 0
      %p172 = por %p170, %p171
      %p173 = scmp.ne.s32.totalorder %s165, %s167
      %p174 = scmp.eq.s32.totalorder %s26, 1
      %p175 = por %p173, %p174
      %p176 = scmp.ne.s32.totalorder %s167, %s168
      %p177 = scmp.eq.s32.totalorder %s26, 0
      %p178 = por %p176, %p177
      %p179 = scmp.ne.s32.totalorder %s167, %s168
      %p180 = scmp.eq.s32.totalorder %s27, 1
      %p181 = por %p179, %p180
      %p183 = scmp.ne.s32.totalorder %s168, %s182
      %p184 = scmp.eq.s32.totalorder %s27, 0
      %p185 = por %p183, %p184
      %s187 = sadd.s32 %s186, 1
      %p190 = scmp.eq.s32.totalorder %s21, 1
      %p191 = scmp.ne.s32.totalorder %s186, %s188
      %p192 = scmp.eq.s32.totalorder %s21, 0
      %p193 = por %p191, %p192
      %p194 = scmp.ne.s32.totalorder %s186, %s188
      %p195 = scmp.eq.s32.totalorder %s26, 1
      %p196 = por %p194, %p195
      %p197 = scmp.ne.s32.totalorder %s188, %s189
      %p198 = scmp.eq.s32.totalorder %s26, 0
      %p199 = por %p197, %p198
      %p200 = scmp.ne.s32.totalorder %s188, %s189
      %p201 = scmp.eq.s32.totalorder %s27, 1
      %p202 = por %p200, %p201
      %p204 = scmp.ne.s32.totalorder %s189, %s203
      %p205 = scmp.eq.s32.totalorder %s27, 0
      %p206 = por %p204, %p205
      %s208 = sadd.s32 %s207, 1
      %p211 = scmp.eq.s32.totalorder %s21, 1
      %p212 = scmp.ne.s32.totalorder %s207, %s209
      %p213 = scmp.eq.s32.totalorder %s21, 0
      %p214 = por %p212, %p213
      %p215 = scmp.ne.s32.totalorder %s207, %s209
      %p216 = scmp.eq.s32.totalorder %s26, 1
      %p217 = por %p215, %p216
      %p218 = scmp.ne.s32.totalorder %s209, %s210
      %p219 = scmp.eq.s32.totalorder %s26, 0
      %p220 = por %p218, %p219
      %p221 = scmp.ne.s32.totalorder %s209, %s210
      %p222 = scmp.eq.s32.totalorder %s27, 1
      %p223 = por %p221, %p222
      %p225 = scmp.ne.s32.totalorder %s210, %s224
      %p226 = scmp.eq.s32.totalorder %s27, 0
      %p227 = por %p225, %p226
      %s229 = sadd.s32 %s228, 1
      %p232 = scmp.eq.s32.totalorder %s21, 1
      %p233 = scmp.ne.s32.totalorder %s228, %s230
      %p234 = scmp.eq.s32.totalorder %s21, 0
      %p235 = por %p233, %p234
      %p236 = scmp.ne.s32.totalorder %s228, %s230
      %p237 = scmp.eq.s32.totalorder %s26, 1
      %p238 = por %p236, %p237
      %p239 = scmp.ne.s32.totalorder %s230, %s231
      %p240 = scmp.eq.s32.totalorder %s26, 0
      %p241 = por %p239, %p240
      %p242 = scmp.ne.s32.totalorder %s230, %s231
      %p243 = scmp.eq.s32.totalorder %s27, 1
      %p244 = por %p242, %p243
      %p246 = scmp.ne.s32.totalorder %s231, %s245
      %p247 = scmp.eq.s32.totalorder %s27, 0
      %p248 = por %p246, %p247
      %s250 = sadd.s32 %s249, 1
      %p253 = scmp.eq.s32.totalorder %s21, 1
      %p254 = scmp.ne.s32.totalorder %s249, %s251
      %p255 = scmp.eq.s32.totalorder %s21, 0
      %p256 = por %p254, %p255
      %p257 = scmp.ne.s32.totalorder %s249, %s251
      %p258 = scmp.eq.s32.totalorder %s26, 1
      %p259 = por %p257, %p258
      %p260 = scmp.ne.s32.totalorder %s251, %s252
      %p261 = scmp.eq.s32.totalorder %s26, 0
      %p262 = por %p260, %p261
      %p263 = scmp.ne.s32.totalorder %s251, %s252
      %p264 = scmp.eq.s32.totalorder %s27, 1
      %p265 = por %p263, %p264
      %p267 = scmp.ne.s32.totalorder %s252, %s266
      %p268 = scmp.eq.s32.totalorder %s27, 0
      %p269 = por %p267, %p268
      %s271 = sadd.s32 %s270, 1
      %p274 = scmp.eq.s32.totalorder %s21, 1
      %p275 = scmp.ne.s32.totalorder %s270, %s272
      %p276 = scmp.eq.s32.totalorder %s21, 0
      %p277 = por %p275, %p276
      %p278 = scmp.ne.s32.totalorder %s270, %s272
      %p279 = scmp.eq.s32.totalorder %s26, 1
      %p280 = por %p278, %p279
      %p281 = scmp.ne.s32.totalorder %s272, %s273
      %p282 = scmp.eq.s32.totalorder %s26, 0
      %p283 = por %p281, %p282
      %p284 = scmp.ne.s32.totalorder %s272, %s273
      %p285 = scmp.eq.s32.totalorder %s27, 1
      %p286 = por %p284, %p285
      %p288 = scmp.ne.s32.totalorder %s273, %s287
      %p289 = scmp.eq.s32.totalorder %s27, 0
      %p290 = por %p288, %p289
      %s291 = ssub.s32 %s21, %s28
      %p292 = scmp.eq.s32.totalorder %s291, 0
      %s294 = sadd.s32 %s293, 1
      %s295 = scalar_select %p292, %s293, %s294
      %p298 = pneg %p292
      %p299 = scmp.eq.s32.totalorder %s21, 1
      %p300 = por %p298, %p299
      %p301 = scmp.ne.s32.totalorder %s293, %s296
      %p302 = scmp.eq.s32.totalorder %s21, 0
      %p303 = por %p301, %p302
      %p304 = scmp.ne.s32.totalorder %s293, %s296
      %p305 = scmp.eq.s32.totalorder %s26, 1
      %p306 = por %p304, %p305
      %p307 = scmp.ne.s32.totalorder %s296, %s297
      %p308 = scmp.eq.s32.totalorder %s26, 0
      %p309 = por %p307, %p308
      %p310 = scmp.ne.s32.totalorder %s296, %s297
      %p311 = scmp.eq.s32.totalorder %s27, 1
      %p312 = por %p310, %p311
      %p314 = scmp.ne.s32.totalorder %s297, %s313
      %p315 = scmp.eq.s32.totalorder %s27, 0
      %p316 = por %p314, %p315
      %p317 = scmp.le.s32.totalorder 1, %s21
      %p318 = scmp.lt.s32.totalorder %s21, 3
      %p319 = pnand %p317, %p318
      %p320 = pneg %p319
      // Predicated region
      $region9: #{tpu_custom_call.1} parent=5 // pred_check
        _
      $region10: #{tpu_custom_call.1} parent=5 // pred_check_branch
        %322 = sbr.rel (%p319) target = $region12
      $region11: #{tpu_custom_call.1} parent=5 // pred_region
        %s323 = ssub.s32 %s21, 1
        // Predicated region
        $region13: #{tpu_custom_call.1} parent=11 // pred_check
          %p324 = pneg %p94
        $region14: #{tpu_custom_call.1} parent=11 // pred_check_branch
          %326 = sbr.rel (%p324) target = $region16
        $region15: #{tpu_custom_call.1} parent=11 // pred_region
          _
        $region16: #{tpu_custom_call.1} parent=11 // pred_fallthru
          _
        // Predicated region
        $region17: #{tpu_custom_call.1} parent=11 // pred_check
          %p327 = pneg %p115
        $region18: #{tpu_custom_call.1} parent=11 // pred_check_branch
          %329 = sbr.rel (%p327) target = $region20
        $region19: #{tpu_custom_call.1} parent=11 // pred_region
          _
        $region20: #{tpu_custom_call.1} parent=11 // pred_fallthru
          _
        // Predicated region
        $region21: #{tpu_custom_call.1} parent=11 // pred_check
          %p330 = pneg %p136
        $region22: #{tpu_custom_call.1} parent=11 // pred_check_branch
          %332 = sbr.rel (%p330) target = $region24
        $region23: #{tpu_custom_call.1} parent=11 // pred_region
          _
        $region24: #{tpu_custom_call.1} parent=11 // pred_fallthru
          _
        // Predicated region
        $region25: #{tpu_custom_call.1} parent=11 // pred_check
          %p333 = pneg %p157
        $region26: #{tpu_custom_call.1} parent=11 // pred_check_branch
          %335 = sbr.rel (%p333) target = $region28
        $region27: #{tpu_custom_call.1} parent=11 // pred_region
          _
        $region28: #{tpu_custom_call.1} parent=11 // pred_fallthru
          _
        // Predicated region
        $region29: #{tpu_custom_call.1} parent=11 // pred_check
          %p336 = pneg %p178
        $region30: #{tpu_custom_call.1} parent=11 // pred_check_branch
          %338 = sbr.rel (%p336) target = $region32
        $region31: #{tpu_custom_call.1} parent=11 // pred_region
          _
        $region32: #{tpu_custom_call.1} parent=11 // pred_fallthru
          _
        // Predicated region
        $region33: #{tpu_custom_call.1} parent=11 // pred_check
          %p339 = pneg %p199
        $region34: #{tpu_custom_call.1} parent=11 // pred_check_branch
          %341 = sbr.rel (%p339) target = $region36
        $region35: #{tpu_custom_call.1} parent=11 // pred_region
          _
        $region36: #{tpu_custom_call.1} parent=11 // pred_fallthru
          _
        // Predicated region
        $region37: #{tpu_custom_call.1} parent=11 // pred_check
          %p342 = pneg %p220
        $region38: #{tpu_custom_call.1} parent=11 // pred_check_branch
          %344 = sbr.rel (%p342) target = $region40
        $region39: #{tpu_custom_call.1} parent=11 // pred_region
          _
        $region40: #{tpu_custom_call.1} parent=11 // pred_fallthru
          _
        // Predicated region
        $region41: #{tpu_custom_call.1} parent=11 // pred_check
          %p345 = pneg %p241
        $region42: #{tpu_custom_call.1} parent=11 // pred_check_branch
          %347 = sbr.rel (%p345) target = $region44
        $region43: #{tpu_custom_call.1} parent=11 // pred_region
          _
        $region44: #{tpu_custom_call.1} parent=11 // pred_fallthru
          _
        // Predicated region
        $region45: #{tpu_custom_call.1} parent=11 // pred_check
          %p348 = pneg %p262
        $region46: #{tpu_custom_call.1} parent=11 // pred_check_branch
          %350 = sbr.rel (%p348) target = $region48
        $region47: #{tpu_custom_call.1} parent=11 // pred_region
          _
        $region48: #{tpu_custom_call.1} parent=11 // pred_fallthru
          _
        // Predicated region
        $region49: #{tpu_custom_call.1} parent=11 // pred_check
          %p351 = pneg %p283
        $region50: #{tpu_custom_call.1} parent=11 // pred_check_branch
          %353 = sbr.rel (%p351) target = $region52
        $region51: #{tpu_custom_call.1} parent=11 // pred_region
          _
        $region52: #{tpu_custom_call.1} parent=11 // pred_fallthru
          _
      $region12: #{tpu_custom_call.1} parent=5 // pred_fallthru
        _
      %p354 = scmp.lt.s32.totalorder %s21, 2
      // Predicated region
      $region53: #{tpu_custom_call.1} parent=5 // pred_check
        %p355 = pneg %p354
      $region54: #{tpu_custom_call.1} parent=5 // pred_check_branch
        %357 = sbr.rel (%p355) target = $region56
      $region55: #{tpu_custom_call.1} parent=5 // pred_region
        // Predicated region
        $region57: #{tpu_custom_call.1} parent=55 // pred_check
          %p358 = pneg %p41
        $region58: #{tpu_custom_call.1} parent=55 // pred_check_branch
          %360 = sbr.rel (%p358) target = $region60
        $region59: #{tpu_custom_call.1} parent=55 // pred_region
          %s361 = smul.u32 8, %s21
          %p362 = scmp.lt.s32.totalorder %s361, 15
          %s363 = scalar_select %p362, %s361, 15
          %s364 = smul.addr %s363, 4
          %s365 = scalar_lea.vmem %s0, %s364
          %s366 = smul.u32 8, %s21
        $region60: #{tpu_custom_call.1} parent=55 // pred_fallthru
          _
        // Predicated region
        $region61: #{tpu_custom_call.1} parent=55 // pred_check
          %p367 = pneg %p67
        $region62: #{tpu_custom_call.1} parent=55 // pred_check_branch
          %369 = sbr.rel (%p367) target = $region64
        $region63: #{tpu_custom_call.1} parent=55 // pred_region
          %s370 = smul.u32 8, %s21
          %p371 = scmp.lt.s32.totalorder %s370, 15
          %s372 = scalar_select %p371, %s370, 15
          %s373 = smul.addr %s372, 8
          %s374 = scalar_lea.vmem %s1, %s373
          %s375 = smul.u32 8, %s21
        $region64: #{tpu_custom_call.1} parent=55 // pred_fallthru
          _
      $region56: #{tpu_custom_call.1} parent=5 // pred_fallthru
        _
      %p376 = scmp.le.s32.totalorder 1, %s21
      %p377 = scmp.lt.s32.totalorder %s21, 3
      %p378 = pnand %p376, %p377
      %p379 = pneg %p378
      // Predicated region
      $region65: #{tpu_custom_call.1} parent=5 // pred_check
        _
      $region66: #{tpu_custom_call.1} parent=5 // pred_check_branch
        %381 = sbr.rel (%p378) target = $region68
      $region67: #{tpu_custom_call.1} parent=5 // pred_region
        %s382 = ssub.s32 %s21, 1
        %s383 = smul.u32 8, %s26
        %p384 = scmp.lt.s32.totalorder %s383, 15
        %s385 = scalar_select %p384, %s383, 15
        %s386 = smul.addr %s385, 4
        %s387 = scalar_lea.vmem %s0, %s386
        %p388 = pneg %p47
        %p389 = pneg %p44
        %s390 = smul.u32 8, %s26
        %p391 = scmp.lt.s32.totalorder %s390, 15
        %s392 = scalar_select %p391, %s390, 15
        %s393 = smul.addr %s392, 8
        %s394 = scalar_lea.vmem %s1, %s393
        %p395 = pneg %p73
        %p396 = pneg %p70
        %p397 = pneg %p94
        %p398 = pneg %p91
        %p399 = pneg %p115
        %p400 = pneg %p112
        %p401 = pneg %p136
        %p402 = pneg %p133
        %p403 = pneg %p157
        %p404 = pneg %p154
        %p405 = pneg %p178
        %p406 = pneg %p175
        %p407 = pneg %p199
        %p408 = pneg %p196
        %p409 = pneg %p220
        %p410 = pneg %p217
        %p411 = pneg %p241
        %p412 = pneg %p238
        %p413 = pneg %p262
        %p414 = pneg %p259
        %p415 = pneg %p283
        %p416 = pneg %p280
        %p417 = pneg %p309
        %p418 = pneg %p306
        %s419 = sand.u32 %s296, 1
        %s420 = scalar_lea.sflag [#allocation6], %s419
        %s421 = sand.u32 %s296, 1
        %s422 = smul.addr %s421, 8
        %s423 = scalar_lea.vmem [#allocation5], %s422
        %s424 = smul.u32 8, %s26
        %p425 = scmp.lt.s32.totalorder %s424, 15
        %s426 = scalar_select %p425, %s424, 15
        %s427 = smul.addr %s426, 4
        %s428 = scalar_lea.vmem %s0, %s427
        %s429 = smul.u32 8, %s26
        %s430 = smul.u32 8, %s26
        %p431 = scmp.lt.s32.totalorder %s430, 15
        %s432 = scalar_select %p431, %s430, 15
        %s433 = smul.addr %s432, 8
        %s434 = scalar_lea.vmem %s1, %s433
        %s435 = smul.u32 8, %s26
        %v437 = vld [vmem:[%s428] sm:$0xf]
        %v438 = vld [vmem:[%s428 + $0x4] sm:$0xf]
        %v439 = vld [vmem:[%s428 + $0x8] sm:$0xf]
        %v440 = vld [vmem:[%s428 + $0xc] sm:$0xf]
        %v441 = vld [vmem:[%s428 + $0x10] sm:$0xf]
        %v442 = vld [vmem:[%s428 + $0x14] sm:$0xf]
        %v443 = vld [vmem:[%s428 + $0x18] sm:$0xf]
        %v444 = vld [vmem:[%s428 + $0x1c] sm:$0xf]
        %v445 = vld [vmem:[%s2] sm:$0xf]
        %v446 = vld [vmem:[%s2 + $0x4] sm:$0xf]
        %v447 = vld [vmem:[%s3] sm:$0x1]
        %v449 = vlaneseq
        %v450 = vshrl.u32 %v449, 7
        %v451 = vsub.s32 0, %v450
        %v452 = vrot.slane %v447, %v451
        %v462 = vunpack.c.l.b16 %v437
        %v463 = vunpack.c.l.b16 %v438
        %v464 = vunpack.c.l.b16 %v439
        %v465 = vunpack.c.l.b16 %v440
        %v466 = vunpack.c.l.b16 %v441
        %v467 = vunpack.c.l.b16 %v442
        %v468 = vunpack.c.l.b16 %v443
        %v469 = vunpack.c.l.b16 %v444
        %v470 = vpack.c.b16 %v463, %v462
        %v471 = vpack.c.b16 %v465, %v464
        %v472 = vpack.c.b16 %v467, %v466
        %v473 = vpack.c.b16 %v469, %v468
        %v476 = vunpack.c.l.b16 %v445
        %v477 = vunpack.c.l.b16 %v446
        %v478 = vpack.c.b16 %v477, %v476
        %vm480 = vcmask 130048
        %v482 = vsel %vm480, %v470, 0
        %v485 = vsel %vm480, %v471, 0
        %v488 = vsel %vm480, %v472, 0
        %v491 = vsel %vm480, %v473, 0
        %493 = vmatprep.subr.bf16.mxu0 0
        %494 = vmatpush1.bf16.msra.mxu0 %v478
        %495 = vmatprep.subr.bf16.mxu0 0
        %496 = vmatpush1.bf16.msra.mxu0 0
        %497 = vmatprep.subr.bf16.mxu0 0
        %498 = vmatpush1.bf16.msra.mxu0 0
        %499 = vmatprep.subr.bf16.mxu0 0
        %500 = vmatpush1.bf16.msra.mxu0 0
        %501 = vmatprep.subr.bf16.mxu0 0
        %502 = vmatpush1.bf16.msra.mxu0 0
        %503 = vmatprep.subr.bf16.mxu0 0
        %504 = vmatpush1.bf16.msra.mxu0 0
        %505 = vmatprep.subr.bf16.mxu0 0
        %506 = vmatpush1.bf16.msra.mxu0 0
        %507 = vmatprep.subr.bf16.mxu0 0
        %508 = vmatpush1.bf16.msra.mxu0 0
        %509 = vmatprep.subr.bf16.mxu0 0
        %510 = vmatpush1.bf16.msra.mxu0 0
        %511 = vmatprep.subr.bf16.mxu0 0
        %512 = vmatpush1.bf16.msra.mxu0 0
        %513 = vmatprep.subr.bf16.mxu0 0
        %514 = vmatpush1.bf16.msra.mxu0 0
        %515 = vmatprep.subr.bf16.mxu0 0
        %516 = vmatpush1.bf16.msra.mxu0 0
        %517 = vmatprep.subr.bf16.mxu0 0
        %518 = vmatpush1.bf16.msra.mxu0 0
        %519 = vmatprep.subr.bf16.mxu0 0
        %520 = vmatpush1.bf16.msra.mxu0 0
        %521 = vmatprep.subr.bf16.mxu0 0
        %522 = vmatpush1.bf16.msra.mxu0 0
        %523 = vmatprep.subr.bf16.mxu0 0
        %524 = vmatpush1.bf16.msra.mxu0 0
        %525 = vmatprep.mubr.bf16.mxu0 0
        %526 = vmatmul.mubr.bf16.gmra.mrb[0].mxu0 %v482
        %v527 = vpop.f32.mrb[0].mxu0
        %v528 = vadd.f32 %v452, %v527
        %v529 = vpop.f32.mrb[0].mxu0
        %v530 = vpop.f32.mrb[0].mxu0
        %v531 = vadd.f32 %v452, %v530
        %v532 = vpop.f32.mrb[0].mxu0
        %533 = vmatprep.mubr.bf16.mxu0 0
        %534 = vmatmul.mubr.bf16.gmra.mrb[0].mxu0 %v485
        %v535 = vpop.f32.mrb[0].mxu0
        %v536 = vadd.f32 %v452, %v535
        %v537 = vpop.f32.mrb[0].mxu0
        %v538 = vpop.f32.mrb[0].mxu0
        %v539 = vadd.f32 %v452, %v538
        %v540 = vpop.f32.mrb[0].mxu0
        %541 = vmatprep.mubr.bf16.mxu0 0
        %542 = vmatmul.mubr.bf16.gmra.mrb[0].mxu0 %v488
        %v543 = vpop.f32.mrb[0].mxu0
        %v544 = vadd.f32 %v452, %v543
        %v545 = vpop.f32.mrb[0].mxu0
        %v546 = vpop.f32.mrb[0].mxu0
        %v547 = vadd.f32 %v452, %v546
        %v548 = vpop.f32.mrb[0].mxu0
        %549 = vmatprep.mubr.bf16.mxu0 0
        %550 = vmatmul.mubr.bf16.gmra.mrb[0].mxu0 %v491
        %v551 = vpop.f32.mrb[0].mxu0
        %v552 = vadd.f32 %v452, %v551
        %v553 = vpop.f32.mrb[0].mxu0
        %v554 = vpop.f32.mrb[0].mxu0
        %v555 = vadd.f32 %v452, %v554
        %v556 = vpop.f32.mrb[0].mxu0
        %557 = vdwg.mxu0
        %vm558 = vcmask 785408
        %559 = vst.msk [vmem:[#allocation2] sm:$0xff] %vm558, %v528
        %560 = vst.msk [vmem:[#allocation2 + $0x8] sm:$0xff] %vm558, %v531
        %561 = vst.msk [vmem:[#allocation2 + $0x10] sm:$0xff] %vm558, %v536
        %562 = vst.msk [vmem:[#allocation2 + $0x18] sm:$0xff] %vm558, %v539
        %563 = vst.msk [vmem:[#allocation2 + $0x20] sm:$0xff] %vm558, %v544
        %564 = vst.msk [vmem:[#allocation2 + $0x28] sm:$0xff] %vm558, %v547
        %565 = vst.msk [vmem:[#allocation2 + $0x30] sm:$0xff] %vm558, %v552
        %566 = vst.msk [vmem:[#allocation2 + $0x38] sm:$0xff] %vm558, %v555
        %v567 = vld [vmem:[%s4] sm:$0xf]
        %v568 = vld [vmem:[%s4 + $0x4] sm:$0xf]
        %v569 = vld [vmem:[%s4 + $0x8] sm:$0xf]
        %v570 = vld [vmem:[%s4 + $0xc] sm:$0xf]
        %v571 = vld [vmem:[%s5] sm:$0x1]
        %v572 = vld [vmem:[#allocation2] sm:$0xff]
        %v573 = vld [vmem:[%s434] sm:$0xff]
        %v574 = vsub.f32 1.0, %v573
        %v579 = vunpack.c.l.b16 %v567
        %v580 = vunpack.c.l.b16 %v568
        %v581 = vunpack.c.l.b16 %v569
        %v582 = vunpack.c.l.b16 %v570
        %v583 = vpack.c.b16 %v580, %v579
        %v584 = vpack.c.b16 %v582, %v581
        %vm587 = vcmask 261120
        %v589 = vsel %vm587, 0, 0
        %591 = vmatprep.subr.bf16.mxu0 0
        %592 = vmatpush1.bf16.msra.mxu0 %v583
        %593 = vmatprep.subr.bf16.mxu0 0
        %594 = vmatpush1.bf16.msra.mxu0 %v584
        %595 = vmatprep.subr.bf16.mxu0 0
        %596 = vmatpush1.bf16.msra.mxu0 0
        %597 = vmatprep.subr.bf16.mxu0 0
        %598 = vmatpush1.bf16.msra.mxu0 0
        %599 = vmatprep.subr.bf16.mxu0 0
        %600 = vmatpush1.bf16.msra.mxu0 0
        %601 = vmatprep.subr.bf16.mxu0 0
        %602 = vmatpush1.bf16.msra.mxu0 0
        %603 = vmatprep.subr.bf16.mxu0 0
        %604 = vmatpush1.bf16.msra.mxu0 0
        %605 = vmatprep.subr.bf16.mxu0 0
        %606 = vmatpush1.bf16.msra.mxu0 0
        %607 = vmatprep.subr.bf16.mxu0 0
        %608 = vmatpush1.bf16.msra.mxu0 0
        %609 = vmatprep.subr.bf16.mxu0 0
        %610 = vmatpush1.bf16.msra.mxu0 0
        %611 = vmatprep.subr.bf16.mxu0 0
        %612 = vmatpush1.bf16.msra.mxu0 0
        %613 = vmatprep.subr.bf16.mxu0 0
        %614 = vmatpush1.bf16.msra.mxu0 0
        %615 = vmatprep.subr.bf16.mxu0 0
        %616 = vmatpush1.bf16.msra.mxu0 0
        %617 = vmatprep.subr.bf16.mxu0 0
        %618 = vmatpush1.bf16.msra.mxu0 0
        %619 = vmatprep.subr.bf16.mxu0 0
        %620 = vmatpush1.bf16.msra.mxu0 0
        %621 = vmatprep.subr.bf16.mxu0 0
        %622 = vmatpush1.bf16.msra.mxu0 0
        %623 = vmatprep.mubr.bf16.mxu0 0
        %624 = vmatmul.mubr.bf16.gmra.mrb[0].mxu0 %v589
        %v625 = vpop.f32.mrb[0].mxu0
        %v626 = vadd.f32 0.0, %v625
        %v627 = vpop.f32.mrb[0].mxu0
        %v628 = vpop.f32.mrb[0].mxu0
        %v629 = vpop.f32.mrb[0].mxu0
        %630 = vdwg.mxu0
        %v631 = vadd.f32 %v572, %v626
        %v632 = vxor.u32 %v631, 2147483648
        %v633 = vmul.f32 %v632, 1.442695
        %v634 = vpow.pop %v633
        %v635 = vadd.f32 %v634, 1.0
        %v636 = vrcp.pop %v635
        %v637 = vmul.f32 1.0, %v636
        %v639 = vlaneseq
        %v640 = vshrl.u32 %v639, 7
        %v641 = vsub.s32 0, %v640
        %v642 = vrot.slane %v571, %v641
        %643 = vrot.lane.b32.xlu0 %v642, 64
        %v644 = vpop.permute.xlu0 %643
        %v646 = vadd.f32 %v626, %v644
        %648 = vrot.lane.b32.xlu0 %v646, 64
        %v649 = vpop.permute.xlu0 %648
        %v651 = vmul.f32 %v637, %v649
        %653 = vrot.lane.b32.xlu0 %v651, 64
        %v654 = vpop.permute.xlu0 %653
        %v656 = vadd.f32 %v572, %v654
        %v657 = vtanh.pop %v656
        %v658 = vsub.f32 1.0, %v637
        %660 = vrot.lane.b32.xlu0 %v657, 96
        %v661 = vpop.permute.xlu0 %660
        %v663 = vmul.f32 %v658, %v661
        %v664 = vmul.f32 %v637, 0.0
        %v665 = vadd.f32 %v663, %v664
        %667 = vset.pattern.permute.xlu0 0
        %668 = vperm.xlu0 %667, %v574
        %v669 = vpop.permute.xlu0 %668
        %v671 = vmul.f32 %v669, %v665
        %673 = vrot.lane.b32.xlu0 %v671, 96
        %v674 = vpop.permute.xlu0 %673
        %676 = vst.msk [vmem:[#allocation3] sm:$0xff] %vm587, %v674
        %v677 = vsub.f32 1.0, %v574
        %679 = vset.pattern.permute.xlu0 0
        %680 = vperm.xlu0 %679, %v677
        %v681 = vpop.permute.xlu0 %680
        %v683 = vmul.f32 %v681, 0.0
        %v684 = vadd.f32 %v671, %v683
        %s685 = scalar_lea.vmem [#allocation2], 8
        %v686 = vld [vmem:[%s685] sm:$0xff]
        %s687 = scalar_lea.vmem %s434, 8
        %v688 = vld [vmem:[%s687] sm:$0xff]
        %v689 = vsub.f32 1.0, %v688
        %v690 = vpack.c.bf16 %v684, %v684
        %692 = vrot.lane.b32.xlu0 %v690, 96
        %v693 = vpop.permute.xlu0 %692
        %v695 = vsel %vm587, %v693, 0
        %697 = vmatprep.subr.bf16.mxu0 0
        %698 = vmatpush1.bf16.msra.mxu0 %v583
        %699 = vmatprep.subr.bf16.mxu0 0
        %700 = vmatpush1.bf16.msra.mxu0 %v584
        %701 = vmatprep.subr.bf16.mxu0 0
        %702 = vmatpush1.bf16.msra.mxu0 0
        %703 = vmatprep.subr.bf16.mxu0 0
        %704 = vmatpush1.bf16.msra.mxu0 0
        %705 = vmatprep.subr.bf16.mxu0 0
        %706 = vmatpush1.bf16.msra.mxu0 0
        %707 = vmatprep.subr.bf16.mxu0 0
        %708 = vmatpush1.bf16.msra.mxu0 0
        %709 = vmatprep.subr.bf16.mxu0 0
        %710 = vmatpush1.bf16.msra.mxu0 0
        %711 = vmatprep.subr.bf16.mxu0 0
        %712 = vmatpush1.bf16.msra.mxu0 0
        %713 = vmatprep.subr.bf16.mxu0 0
        %714 = vmatpush1.bf16.msra.mxu0 0
        %715 = vmatprep.subr.bf16.mxu0 0
        %716 = vmatpush1.bf16.msra.mxu0 0
        %717 = vmatprep.subr.bf16.mxu0 0
        %718 = vmatpush1.bf16.msra.mxu0 0
        %719 = vmatprep.subr.bf16.mxu0 0
        %720 = vmatpush1.bf16.msra.mxu0 0
        %721 = vmatprep.subr.bf16.mxu0 0
        %722 = vmatpush1.bf16.msra.mxu0 0
        %723 = vmatprep.subr.bf16.mxu0 0
        %724 = vmatpush1.bf16.msra.mxu0 0
        %725 = vmatprep.subr.bf16.mxu0 0
        %726 = vmatpush1.bf16.msra.mxu0 0
        %727 = vmatprep.subr.bf16.mxu0 0
        %728 = vmatpush1.bf16.msra.mxu0 0
        %729 = vmatprep.mubr.bf16.mxu0 0
        %730 = vmatmul.mubr.bf16.gmra.mrb[0].mxu0 %v695
        %v731 = vpop.f32.mrb[0].mxu0
        %v732 = vadd.f32 0.0, %v731
        %v733 = vpop.f32.mrb[0].mxu0
        %v734 = vpop.f32.mrb[0].mxu0
        %v735 = vpop.f32.mrb[0].mxu0
        %736 = vdwg.mxu0
        %v737 = vadd.f32 %v686, %v732
        %v738 = vxor.u32 %v737, 2147483648
        %v739 = vmul.f32 %v738, 1.442695
        %v740 = vpow.pop %v739
        %v741 = vadd.f32 %v740, 1.0
        %v742 = vrcp.pop %v741
        %v743 = vmul.f32 1.0, %v742
        %v744 = vadd.f32 %v732, %v644
        %746 = vrot.lane.b32.xlu0 %v744, 64
        %v747 = vpop.permute.xlu0 %746
        %v749 = vmul.f32 %v743, %v747
        %751 = vrot.lane.b32.xlu0 %v749, 64
        %v752 = vpop.permute.xlu0 %751
        %v754 = vadd.f32 %v686, %v752
        %v755 = vtanh.pop %v754
        %v756 = vsub.f32 1.0, %v743
        %758 = vrot.lane.b32.xlu0 %v755, 96
        %v759 = vpop.permute.xlu0 %758
        %v761 = vmul.f32 %v756, %v759
        %v762 = vmul.f32 %v743, %v684
        %v763 = vadd.f32 %v761, %v762
        %765 = vset.pattern.permute.xlu0 0
        %766 = vperm.xlu0 %765, %v689
        %v767 = vpop.permute.xlu0 %766
        %v769 = vmul.f32 %v767, %v763
        %771 = vrot.lane.b32.xlu0 %v769, 96
        %v772 = vpop.permute.xlu0 %771
        %s774 = scalar_lea.vmem [#allocation3], 8
        %775 = vst.msk [vmem:[%s774] sm:$0xff] %vm587, %v772
        %v776 = vsub.f32 1.0, %v689
        %778 = vset.pattern.permute.xlu0 0
        %779 = vperm.xlu0 %778, %v776
        %v780 = vpop.permute.xlu0 %779
        %v782 = vmul.f32 %v780, %v684
        %v783 = vadd.f32 %v769, %v782
        %s784 = scalar_lea.vmem [#allocation2], 16
        %v785 = vld [vmem:[%s784] sm:$0xff]
        %s786 = scalar_lea.vmem %s434, 16
        %v787 = vld [vmem:[%s786] sm:$0xff]
        %v788 = vsub.f32 1.0, %v787
        %v789 = vpack.c.bf16 %v783, %v783
        %791 = vrot.lane.b32.xlu0 %v789, 96
        %v792 = vpop.permute.xlu0 %791
        %v794 = vsel %vm587, %v792, 0
        %796 = vmatprep.subr.bf16.mxu0 0
        %797 = vmatpush1.bf16.msra.mxu0 %v583
        %798 = vmatprep.subr.bf16.mxu0 0
        %799 = vmatpush1.bf16.msra.mxu0 %v584
        %800 = vmatprep.subr.bf16.mxu0 0
        %801 = vmatpush1.bf16.msra.mxu0 0
        %802 = vmatprep.subr.bf16.mxu0 0
        %803 = vmatpush1.bf16.msra.mxu0 0
        %804 = vmatprep.subr.bf16.mxu0 0
        %805 = vmatpush1.bf16.msra.mxu0 0
        %806 = vmatprep.subr.bf16.mxu0 0
        %807 = vmatpush1.bf16.msra.mxu0 0
        %808 = vmatprep.subr.bf16.mxu0 0
        %809 = vmatpush1.bf16.msra.mxu0 0
        %810 = vmatprep.subr.bf16.mxu0 0
        %811 = vmatpush1.bf16.msra.mxu0 0
        %812 = vmatprep.subr.bf16.mxu0 0
        %813 = vmatpush1.bf16.msra.mxu0 0
        %814 = vmatprep.subr.bf16.mxu0 0
        %815 = vmatpush1.bf16.msra.mxu0 0
        %816 = vmatprep.subr.bf16.mxu0 0
        %817 = vmatpush1.bf16.msra.mxu0 0
        %818 = vmatprep.subr.bf16.mxu0 0
        %819 = vmatpush1.bf16.msra.mxu0 0
        %820 = vmatprep.subr.bf16.mxu0 0
        %821 = vmatpush1.bf16.msra.mxu0 0
        %822 = vmatprep.subr.bf16.mxu0 0
        %823 = vmatpush1.bf16.msra.mxu0 0
        %824 = vmatprep.subr.bf16.mxu0 0
        %825 = vmatpush1.bf16.msra.mxu0 0
        %826 = vmatprep.subr.bf16.mxu0 0
        %827 = vmatpush1.bf16.msra.mxu0 0
        %828 = vmatprep.mubr.bf16.mxu0 0
        %829 = vmatmul.mubr.bf16.gmra.mrb[0].mxu0 %v794
        %v830 = vpop.f32.mrb[0].mxu0
        %v831 = vadd.f32 0.0, %v830
        %v832 = vpop.f32.mrb[0].mxu0
        %v833 = vpop.f32.mrb[0].mxu0
        %v834 = vpop.f32.mrb[0].mxu0
        %835 = vdwg.mxu0
        %v836 = vadd.f32 %v785, %v831
        %v837 = vxor.u32 %v836, 2147483648
        %v838 = vmul.f32 %v837, 1.442695
        %v839 = vpow.pop %v838
        %v840 = vadd.f32 %v839, 1.0
        %v841 = vrcp.pop %v840
        %v842 = vmul.f32 1.0, %v841
        %v843 = vadd.f32 %v831, %v644
        %845 = vrot.lane.b32.xlu0 %v843, 64
        %v846 = vpop.permute.xlu0 %845
        %v848 = vmul.f32 %v842, %v846
        %850 = vrot.lane.b32.xlu0 %v848, 64
        %v851 = vpop.permute.xlu0 %850
        %v853 = vadd.f32 %v785, %v851
        %v854 = vtanh.pop %v853
        %v855 = vsub.f32 1.0, %v842
        %857 = vrot.lane.b32.xlu0 %v854, 96
        %v858 = vpop.permute.xlu0 %857
        %v860 = vmul.f32 %v855, %v858
        %v861 = vmul.f32 %v842, %v783
        %v862 = vadd.f32 %v860, %v861
        %864 = vset.pattern.permute.xlu0 0
        %865 = vperm.xlu0 %864, %v788
        %v866 = vpop.permute.xlu0 %865
        %v868 = vmul.f32 %v866, %v862
        %870 = vrot.lane.b32.xlu0 %v868, 96
        %v871 = vpop.permute.xlu0 %870
        %s873 = scalar_lea.vmem [#allocation3], 16
        %874 = vst.msk [vmem:[%s873] sm:$0xff] %vm587, %v871
        %v875 = vsub.f32 1.0, %v788
        %877 = vset.pattern.permute.xlu0 0
        %878 = vperm.xlu0 %877, %v875
        %v879 = vpop.permute.xlu0 %878
        %v881 = vmul.f32 %v879, %v783
        %v882 = vadd.f32 %v868, %v881
        %s883 = scalar_lea.vmem [#allocation2], 24
        %v884 = vld [vmem:[%s883] sm:$0xff]
        %s885 = scalar_lea.vmem %s434, 24
        %v886 = vld [vmem:[%s885] sm:$0xff]
        %v887 = vsub.f32 1.0, %v886
        %v888 = vpack.c.bf16 %v882, %v882
        %890 = vrot.lane.b32.xlu0 %v888, 96
        %v891 = vpop.permute.xlu0 %890
        %v893 = vsel %vm587, %v891, 0
        %895 = vmatprep.subr.bf16.mxu0 0
        %896 = vmatpush1.bf16.msra.mxu0 %v583
        %897 = vmatprep.subr.bf16.mxu0 0
        %898 = vmatpush1.bf16.msra.mxu0 %v584
        %899 = vmatprep.subr.bf16.mxu0 0
        %900 = vmatpush1.bf16.msra.mxu0 0
        %901 = vmatprep.subr.bf16.mxu0 0
        %902 = vmatpush1.bf16.msra.mxu0 0
        %903 = vmatprep.subr.bf16.mxu0 0
        %904 = vmatpush1.bf16.msra.mxu0 0
        %905 = vmatprep.subr.bf16.mxu0 0
        %906 = vmatpush1.bf16.msra.mxu0 0
        %907 = vmatprep.subr.bf16.mxu0 0
        %908 = vmatpush1.bf16.msra.mxu0 0
        %909 = vmatprep.subr.bf16.mxu0 0
        %910 = vmatpush1.bf16.msra.mxu0 0
        %911 = vmatprep.subr.bf16.mxu0 0
        %912 = vmatpush1.bf16.msra.mxu0 0
        %913 = vmatprep.subr.bf16.mxu0 0
        %914 = vmatpush1.bf16.msra.mxu0 0
        %915 = vmatprep.subr.bf16.mxu0 0
        %916 = vmatpush1.bf16.msra.mxu0 0
        %917 = vmatprep.subr.bf16.mxu0 0
        %918 = vmatpush1.bf16.msra.mxu0 0
        %919 = vmatprep.subr.bf16.mxu0 0
        %920 = vmatpush1.bf16.msra.mxu0 0
        %921 = vmatprep.subr.bf16.mxu0 0
        %922 = vmatpush1.bf16.msra.mxu0 0
        %923 = vmatprep.subr.bf16.mxu0 0
        %924 = vmatpush1.bf16.msra.mxu0 0
        %925 = vmatprep.subr.bf16.mxu0 0
        %926 = vmatpush1.bf16.msra.mxu0 0
        %927 = vmatprep.mubr.bf16.mxu0 0
        %928 = vmatmul.mubr.bf16.gmra.mrb[0].mxu0 %v893
        %v929 = vpop.f32.mrb[0].mxu0
        %v930 = vadd.f32 0.0, %v929
        %v931 = vpop.f32.mrb[0].mxu0
        %v932 = vpop.f32.mrb[0].mxu0
        %v933 = vpop.f32.mrb[0].mxu0
        %934 = vdwg.mxu0
        %v935 = vadd.f32 %v884, %v930
        %v936 = vxor.u32 %v935, 2147483648
        %v937 = vmul.f32 %v936, 1.442695
        %v938 = vpow.pop %v937
        %v939 = vadd.f32 %v938, 1.0
        %v940 = vrcp.pop %v939
        %v941 = vmul.f32 1.0, %v940
        %v942 = vadd.f32 %v930, %v644
        %944 = vrot.lane.b32.xlu0 %v942, 64
        %v945 = vpop.permute.xlu0 %944
        %v947 = vmul.f32 %v941, %v945
        %949 = vrot.lane.b32.xlu0 %v947, 64
        %v950 = vpop.permute.xlu0 %949
        %v952 = vadd.f32 %v884, %v950
        %v953 = vtanh.pop %v952
        %v954 = vsub.f32 1.0, %v941
        %956 = vrot.lane.b32.xlu0 %v953, 96
        %v957 = vpop.permute.xlu0 %956
        %v959 = vmul.f32 %v954, %v957
        %v960 = vmul.f32 %v941, %v882
        %v961 = vadd.f32 %v959, %v960
        %963 = vset.pattern.permute.xlu0 0
        %964 = vperm.xlu0 %963, %v887
        %v965 = vpop.permute.xlu0 %964
        %v967 = vmul.f32 %v965, %v961
        %969 = vrot.lane.b32.xlu0 %v967, 96
        %v970 = vpop.permute.xlu0 %969
        %s972 = scalar_lea.vmem [#allocation3], 24
        %973 = vst.msk [vmem:[%s972] sm:$0xff] %vm587, %v970
        %v974 = vsub.f32 1.0, %v887
        %976 = vset.pattern.permute.xlu0 0
        %977 = vperm.xlu0 %976, %v974
        %v978 = vpop.permute.xlu0 %977
        %v980 = vmul.f32 %v978, %v882
        %v981 = vadd.f32 %v967, %v980
        %s982 = scalar_lea.vmem [#allocation2], 32
        %v983 = vld [vmem:[%s982] sm:$0xff]
        %s984 = scalar_lea.vmem %s434, 32
        %v985 = vld [vmem:[%s984] sm:$0xff]
        %v986 = vsub.f32 1.0, %v985
        %v987 = vpack.c.bf16 %v981, %v981
        %989 = vrot.lane.b32.xlu0 %v987, 96
        %v990 = vpop.permute.xlu0 %989
        %v992 = vsel %vm587, %v990, 0
        %994 = vmatprep.subr.bf16.mxu0 0
        %995 = vmatpush1.bf16.msra.mxu0 %v583
        %996 = vmatprep.subr.bf16.mxu0 0
        %997 = vmatpush1.bf16.msra.mxu0 %v584
        %998 = vmatprep.subr.bf16.mxu0 0
        %999 = vmatpush1.bf16.msra.mxu0 0
        %1000 = vmatprep.subr.bf16.mxu0 0
        %1001 = vmatpush1.bf16.msra.mxu0 0
        %1002 = vmatprep.subr.bf16.mxu0 0
        %1003 = vmatpush1.bf16.msra.mxu0 0
        %1004 = vmatprep.subr.bf16.mxu0 0
        %1005 = vmatpush1.bf16.msra.mxu0 0
        %1006 = vmatprep.subr.bf16.mxu0 0
        %1007 = vmatpush1.bf16.msra.mxu0 0
        %1008 = vmatprep.subr.bf16.mxu0 0
        %1009 = vmatpush1.bf16.msra.mxu0 0
        %1010 = vmatprep.subr.bf16.mxu0 0
        %1011 = vmatpush1.bf16.msra.mxu0 0
        %1012 = vmatprep.subr.bf16.mxu0 0
        %1013 = vmatpush1.bf16.msra.mxu0 0
        %1014 = vmatprep.subr.bf16.mxu0 0
        %1015 = vmatpush1.bf16.msra.mxu0 0
        %1016 = vmatprep.subr.bf16.mxu0 0
        %1017 = vmatpush1.bf16.msra.mxu0 0
        %1018 = vmatprep.subr.bf16.mxu0 0
        %1019 = vmatpush1.bf16.msra.mxu0 0
        %1020 = vmatprep.subr.bf16.mxu0 0
        %1021 = vmatpush1.bf16.msra.mxu0 0
        %1022 = vmatprep.subr.bf16.mxu0 0
        %1023 = vmatpush1.bf16.msra.mxu0 0
        %1024 = vmatprep.subr.bf16.mxu0 0
        %1025 = vmatpush1.bf16.msra.mxu0 0
        %1026 = vmatprep.mubr.bf16.mxu0 0
        %1027 = vmatmul.mubr.bf16.gmra.mrb[0].mxu0 %v992
        %v1028 = vpop.f32.mrb[0].mxu0
        %v1029 = vadd.f32 0.0, %v1028
        %v1030 = vpop.f32.mrb[0].mxu0
        %v1031 = vpop.f32.mrb[0].mxu0
        %v1032 = vpop.f32.mrb[0].mxu0
        %1033 = vdwg.mxu0
        %v1034 = vadd.f32 %v983, %v1029
        %v1035 = vxor.u32 %v1034, 2147483648
        %v1036 = vmul.f32 %v1035, 1.442695
        %v1037 = vpow.pop %v1036
        %v1038 = vadd.f32 %v1037, 1.0
        %v1039 = vrcp.pop %v1038
        %v1040 = vmul.f32 1.0, %v1039
        %v1041 = vadd.f32 %v1029, %v644
        %1043 = vrot.lane.b32.xlu0 %v1041, 64
        %v1044 = vpop.permute.xlu0 %1043
        %v1046 = vmul.f32 %v1040, %v1044
        %1048 = vrot.lane.b32.xlu0 %v1046, 64
        %v1049 = vpop.permute.xlu0 %1048
        %v1051 = vadd.f32 %v983, %v1049
        %v1052 = vtanh.pop %v1051
        %v1053 = vsub.f32 1.0, %v1040
        %1055 = vrot.lane.b32.xlu0 %v1052, 96
        %v1056 = vpop.permute.xlu0 %1055
        %v1058 = vmul.f32 %v1053, %v1056
        %v1059 = vmul.f32 %v1040, %v981
        %v1060 = vadd.f32 %v1058, %v1059
        %1062 = vset.pattern.permute.xlu0 0
        %1063 = vperm.xlu0 %1062, %v986
        %v1064 = vpop.permute.xlu0 %1063
        %v1066 = vmul.f32 %v1064, %v1060
        %1068 = vrot.lane.b32.xlu0 %v1066, 96
        %v1069 = vpop.permute.xlu0 %1068
        %s1071 = scalar_lea.vmem [#allocation3], 32
        %1072 = vst.msk [vmem:[%s1071] sm:$0xff] %vm587, %v1069
        %v1073 = vsub.f32 1.0, %v986
        %1075 = vset.pattern.permute.xlu0 0
        %1076 = vperm.xlu0 %1075, %v1073
        %v1077 = vpop.permute.xlu0 %1076
        %v1079 = vmul.f32 %v1077, %v981
        %v1080 = vadd.f32 %v1066, %v1079
        %s1081 = scalar_lea.vmem [#allocation2], 40
        %v1082 = vld [vmem:[%s1081] sm:$0xff]
        %s1083 = scalar_lea.vmem %s434, 40
        %v1084 = vld [vmem:[%s1083] sm:$0xff]
        %v1085 = vsub.f32 1.0, %v1084
        %v1086 = vpack.c.bf16 %v1080, %v1080
        %1088 = vrot.lane.b32.xlu0 %v1086, 96
        %v1089 = vpop.permute.xlu0 %1088
        %v1091 = vsel %vm587, %v1089, 0
        %1093 = vmatprep.subr.bf16.mxu0 0
        %1094 = vmatpush1.bf16.msra.mxu0 %v583
        %1095 = vmatprep.subr.bf16.mxu0 0
        %1096 = vmatpush1.bf16.msra.mxu0 %v584
        %1097 = vmatprep.subr.bf16.mxu0 0
        %1098 = vmatpush1.bf16.msra.mxu0 0
        %1099 = vmatprep.subr.bf16.mxu0 0
        %1100 = vmatpush1.bf16.msra.mxu0 0
        %1101 = vmatprep.subr.bf16.mxu0 0
        %1102 = vmatpush1.bf16.msra.mxu0 0
        %1103 = vmatprep.subr.bf16.mxu0 0
        %1104 = vmatpush1.bf16.msra.mxu0 0
        %1105 = vmatprep.subr.bf16.mxu0 0
        %1106 = vmatpush1.bf16.msra.mxu0 0
        %1107 = vmatprep.subr.bf16.mxu0 0
        %1108 = vmatpush1.bf16.msra.mxu0 0
        %1109 = vmatprep.subr.bf16.mxu0 0
        %1110 = vmatpush1.bf16.msra.mxu0 0
        %1111 = vmatprep.subr.bf16.mxu0 0
        %1112 = vmatpush1.bf16.msra.mxu0 0
        %1113 = vmatprep.subr.bf16.mxu0 0
        %1114 = vmatpush1.bf16.msra.mxu0 0
        %1115 = vmatprep.subr.bf16.mxu0 0
        %1116 = vmatpush1.bf16.msra.mxu0 0
        %1117 = vmatprep.subr.bf16.mxu0 0
        %1118 = vmatpush1.bf16.msra.mxu0 0
        %1119 = vmatprep.subr.bf16.mxu0 0
        %1120 = vmatpush1.bf16.msra.mxu0 0
        %1121 = vmatprep.subr.bf16.mxu0 0
        %1122 = vmatpush1.bf16.msra.mxu0 0
        %1123 = vmatprep.subr.bf16.mxu0 0
        %1124 = vmatpush1.bf16.msra.mxu0 0
        %1125 = vmatprep.mubr.bf16.mxu0 0
        %1126 = vmatmul.mubr.bf16.gmra.mrb[0].mxu0 %v1091
        %v1127 = vpop.f32.mrb[0].mxu0
        %v1128 = vadd.f32 0.0, %v1127
        %v1129 = vpop.f32.mrb[0].mxu0
        %v1130 = vpop.f32.mrb[0].mxu0
        %v1131 = vpop.f32.mrb[0].mxu0
        %1132 = vdwg.mxu0
        %v1133 = vadd.f32 %v1082, %v1128
        %v1134 = vxor.u32 %v1133, 2147483648
        %v1135 = vmul.f32 %v1134, 1.442695
        %v1136 = vpow.pop %v1135
        %v1137 = vadd.f32 %v1136, 1.0
        %v1138 = vrcp.pop %v1137
        %v1139 = vmul.f32 1.0, %v1138
        %v1140 = vadd.f32 %v1128, %v644
        %1142 = vrot.lane.b32.xlu0 %v1140, 64
        %v1143 = vpop.permute.xlu0 %1142
        %v1145 = vmul.f32 %v1139, %v1143
        %1147 = vrot.lane.b32.xlu0 %v1145, 64
        %v1148 = vpop.permute.xlu0 %1147
        %v1150 = vadd.f32 %v1082, %v1148
        %v1151 = vtanh.pop %v1150
        %v1152 = vsub.f32 1.0, %v1139
        %1154 = vrot.lane.b32.xlu0 %v1151, 96
        %v1155 = vpop.permute.xlu0 %1154
        %v1157 = vmul.f32 %v1152, %v1155
        %v1158 = vmul.f32 %v1139, %v1080
        %v1159 = vadd.f32 %v1157, %v1158
        %1161 = vset.pattern.permute.xlu0 0
        %1162 = vperm.xlu0 %1161, %v1085
        %v1163 = vpop.permute.xlu0 %1162
        %v1165 = vmul.f32 %v1163, %v1159
        %1167 = vrot.lane.b32.xlu0 %v1165, 96
        %v1168 = vpop.permute.xlu0 %1167
        %s1170 = scalar_lea.vmem [#allocation3], 40
        %1171 = vst.msk [vmem:[%s1170] sm:$0xff] %vm587, %v1168
        %v1172 = vsub.f32 1.0, %v1085
        %1174 = vset.pattern.permute.xlu0 0
        %1175 = vperm.xlu0 %1174, %v1172
        %v1176 = vpop.permute.xlu0 %1175
        %v1178 = vmul.f32 %v1176, %v1080
        %v1179 = vadd.f32 %v1165, %v1178
        %s1180 = scalar_lea.vmem [#allocation2], 48
        %v1181 = vld [vmem:[%s1180] sm:$0xff]
        %s1182 = scalar_lea.vmem %s434, 48
        %v1183 = vld [vmem:[%s1182] sm:$0xff]
        %v1184 = vsub.f32 1.0, %v1183
        %v1185 = vpack.c.bf16 %v1179, %v1179
        %1187 = vrot.lane.b32.xlu0 %v1185, 96
        %v1188 = vpop.permute.xlu0 %1187
        %v1190 = vsel %vm587, %v1188, 0
        %1192 = vmatprep.subr.bf16.mxu0 0
        %1193 = vmatpush1.bf16.msra.mxu0 %v583
        %1194 = vmatprep.subr.bf16.mxu0 0
        %1195 = vmatpush1.bf16.msra.mxu0 %v584
        %1196 = vmatprep.subr.bf16.mxu0 0
        %1197 = vmatpush1.bf16.msra.mxu0 0
        %1198 = vmatprep.subr.bf16.mxu0 0
        %1199 = vmatpush1.bf16.msra.mxu0 0
        %1200 = vmatprep.subr.bf16.mxu0 0
        %1201 = vmatpush1.bf16.msra.mxu0 0
        %1202 = vmatprep.subr.bf16.mxu0 0
        %1203 = vmatpush1.bf16.msra.mxu0 0
        %1204 = vmatprep.subr.bf16.mxu0 0
        %1205 = vmatpush1.bf16.msra.mxu0 0
        %1206 = vmatprep.subr.bf16.mxu0 0
        %1207 = vmatpush1.bf16.msra.mxu0 0
        %1208 = vmatprep.subr.bf16.mxu0 0
        %1209 = vmatpush1.bf16.msra.mxu0 0
        %1210 = vmatprep.subr.bf16.mxu0 0
        %1211 = vmatpush1.bf16.msra.mxu0 0
        %1212 = vmatprep.subr.bf16.mxu0 0
        %1213 = vmatpush1.bf16.msra.mxu0 0
        %1214 = vmatprep.subr.bf16.mxu0 0
        %1215 = vmatpush1.bf16.msra.mxu0 0
        %1216 = vmatprep.subr.bf16.mxu0 0
        %1217 = vmatpush1.bf16.msra.mxu0 0
        %1218 = vmatprep.subr.bf16.mxu0 0
        %1219 = vmatpush1.bf16.msra.mxu0 0
        %1220 = vmatprep.subr.bf16.mxu0 0
        %1221 = vmatpush1.bf16.msra.mxu0 0
        %1222 = vmatprep.subr.bf16.mxu0 0
        %1223 = vmatpush1.bf16.msra.mxu0 0
        %1224 = vmatprep.mubr.bf16.mxu0 0
        %1225 = vmatmul.mubr.bf16.gmra.mrb[0].mxu0 %v1190
        %v1226 = vpop.f32.mrb[0].mxu0
        %v1227 = vadd.f32 0.0, %v1226
        %v1228 = vpop.f32.mrb[0].mxu0
        %v1229 = vpop.f32.mrb[0].mxu0
        %v1230 = vpop.f32.mrb[0].mxu0
        %1231 = vdwg.mxu0
        %v1232 = vadd.f32 %v1181, %v1227
        %v1233 = vxor.u32 %v1232, 2147483648
        %v1234 = vmul.f32 %v1233, 1.442695
        %v1235 = vpow.pop %v1234
        %v1236 = vadd.f32 %v1235, 1.0
        %v1237 = vrcp.pop %v1236
        %v1238 = vmul.f32 1.0, %v1237
        %v1239 = vadd.f32 %v1227, %v644
        %1241 = vrot.lane.b32.xlu0 %v1239, 64
        %v1242 = vpop.permute.xlu0 %1241
        %v1244 = vmul.f32 %v1238, %v1242
        %1246 = vrot.lane.b32.xlu0 %v1244, 64
        %v1247 = vpop.permute.xlu0 %1246
        %v1249 = vadd.f32 %v1181, %v1247
        %v1250 = vtanh.pop %v1249
        %v1251 = vsub.f32 1.0, %v1238
        %1253 = vrot.lane.b32.xlu0 %v1250, 96
        %v1254 = vpop.permute.xlu0 %1253
        %v1256 = vmul.f32 %v1251, %v1254
        %v1257 = vmul.f32 %v1238, %v1179
        %v1258 = vadd.f32 %v1256, %v1257
        %1260 = vset.pattern.permute.xlu0 0
        %1261 = vperm.xlu0 %1260, %v1184
        %v1262 = vpop.permute.xlu0 %1261
        %v1264 = vmul.f32 %v1262, %v1258
        %1266 = vrot.lane.b32.xlu0 %v1264, 96
        %v1267 = vpop.permute.xlu0 %1266
        %s1269 = scalar_lea.vmem [#allocation3], 48
        %1270 = vst.msk [vmem:[%s1269] sm:$0xff] %vm587, %v1267
        %v1271 = vsub.f32 1.0, %v1184
        %1273 = vset.pattern.permute.xlu0 0
        %1274 = vperm.xlu0 %1273, %v1271
        %v1275 = vpop.permute.xlu0 %1274
        %v1277 = vmul.f32 %v1275, %v1179
        %v1278 = vadd.f32 %v1264, %v1277
        %s1279 = scalar_lea.vmem [#allocation2], 56
        %v1280 = vld [vmem:[%s1279] sm:$0xff]
        %s1281 = scalar_lea.vmem %s434, 56
        %v1282 = vld [vmem:[%s1281] sm:$0xff]
        %v1283 = vsub.f32 1.0, %v1282
        %v1284 = vpack.c.bf16 %v1278, %v1278
        %1286 = vrot.lane.b32.xlu0 %v1284, 96
        %v1287 = vpop.permute.xlu0 %1286
        %v1289 = vsel %vm587, %v1287, 0
        %1291 = vmatprep.subr.bf16.mxu0 0
        %1292 = vmatpush1.bf16.msra.mxu0 %v583
        %1293 = vmatprep.subr.bf16.mxu0 0
        %1294 = vmatpush1.bf16.msra.mxu0 %v584
        %1295 = vmatprep.subr.bf16.mxu0 0
        %1296 = vmatpush1.bf16.msra.mxu0 0
        %1297 = vmatprep.subr.bf16.mxu0 0
        %1298 = vmatpush1.bf16.msra.mxu0 0
        %1299 = vmatprep.subr.bf16.mxu0 0
        %1300 = vmatpush1.bf16.msra.mxu0 0
        %1301 = vmatprep.subr.bf16.mxu0 0
        %1302 = vmatpush1.bf16.msra.mxu0 0
        %1303 = vmatprep.subr.bf16.mxu0 0
        %1304 = vmatpush1.bf16.msra.mxu0 0
        %1305 = vmatprep.subr.bf16.mxu0 0
        %1306 = vmatpush1.bf16.msra.mxu0 0
        %1307 = vmatprep.subr.bf16.mxu0 0
        %1308 = vmatpush1.bf16.msra.mxu0 0
        %1309 = vmatprep.subr.bf16.mxu0 0
        %1310 = vmatpush1.bf16.msra.mxu0 0
        %1311 = vmatprep.subr.bf16.mxu0 0
        %1312 = vmatpush1.bf16.msra.mxu0 0
        %1313 = vmatprep.subr.bf16.mxu0 0
        %1314 = vmatpush1.bf16.msra.mxu0 0
        %1315 = vmatprep.subr.bf16.mxu0 0
        %1316 = vmatpush1.bf16.msra.mxu0 0
        %1317 = vmatprep.subr.bf16.mxu0 0
        %1318 = vmatpush1.bf16.msra.mxu0 0
        %1319 = vmatprep.subr.bf16.mxu0 0
        %1320 = vmatpush1.bf16.msra.mxu0 0
        %1321 = vmatprep.subr.bf16.mxu0 0
        %1322 = vmatpush1.bf16.msra.mxu0 0
        %1323 = vmatprep.mubr.bf16.mxu0 0
        %1324 = vmatmul.mubr.bf16.gmra.mrb[0].mxu0 %v1289
        %v1325 = vpop.f32.mrb[0].mxu0
        %v1326 = vadd.f32 0.0, %v1325
        %v1327 = vpop.f32.mrb[0].mxu0
        %v1328 = vpop.f32.mrb[0].mxu0
        %v1329 = vpop.f32.mrb[0].mxu0
        %1330 = vdwg.mxu0
        %v1331 = vadd.f32 %v1280, %v1326
        %v1332 = vxor.u32 %v1331, 2147483648
        %v1333 = vmul.f32 %v1332, 1.442695
        %v1334 = vpow.pop %v1333
        %v1335 = vadd.f32 %v1334, 1.0
        %v1336 = vrcp.pop %v1335
        %v1337 = vmul.f32 1.0, %v1336
        %v1338 = vadd.f32 %v1326, %v644
        %1340 = vrot.lane.b32.xlu0 %v1338, 64
        %v1341 = vpop.permute.xlu0 %1340
        %v1343 = vmul.f32 %v1337, %v1341
        %1345 = vrot.lane.b32.xlu0 %v1343, 64
        %v1346 = vpop.permute.xlu0 %1345
        %v1348 = vadd.f32 %v1280, %v1346
        %v1349 = vtanh.pop %v1348
        %v1350 = vsub.f32 1.0, %v1337
        %1352 = vrot.lane.b32.xlu0 %v1349, 96
        %v1353 = vpop.permute.xlu0 %1352
        %v1355 = vmul.f32 %v1350, %v1353
        %v1356 = vmul.f32 %v1337, %v1278
        %v1357 = vadd.f32 %v1355, %v1356
        %1359 = vset.pattern.permute.xlu0 0
        %1360 = vperm.xlu0 %1359, %v1283
        %v1361 = vpop.permute.xlu0 %1360
        %v1363 = vmul.f32 %v1361, %v1357
        %1365 = vrot.lane.b32.xlu0 %v1363, 96
        %v1366 = vpop.permute.xlu0 %1365
        %s1368 = scalar_lea.vmem [#allocation3], 56
        %1369 = vst.msk [vmem:[%s1368] sm:$0xff] %vm587, %v1366
        %v1370 = vsub.f32 1.0, %v1283
        %1372 = vset.pattern.permute.xlu0 0
        %1373 = vperm.xlu0 %1372, %v1370
        %v1374 = vpop.permute.xlu0 %1373
        %v1376 = vmul.f32 %v1374, %v1278
        %v1377 = vadd.f32 %v1363, %v1376
        %v1378 = vpack.c.bf16 %v1377, %v1377
        %v1379 = vld [vmem:[%s7] sm:$0xf]
        %v1380 = vld [vmem:[%s7 + $0x4] sm:$0xf]
        %v1381 = vld [vmem:[%s7 + $0x8] sm:$0xf]
        %v1382 = vld [vmem:[%s7 + $0xc] sm:$0xf]
        %v1383 = vld [vmem:[%s8] sm:$0x1]
        %v1385 = vlaneseq
        %v1386 = vshrl.u32 %v1385, 7
        %v1387 = vsub.s32 0, %v1386
        %v1388 = vrot.slane %v1383, %v1387
        %1391 = vrot.lane.b32.xlu0 %v1378, 96
        %v1392 = vpop.permute.xlu0 %1391
        %v1397 = vunpack.c.l.b16 %v1379
        %v1398 = vunpack.c.l.b16 %v1380
        %v1399 = vunpack.c.l.b16 %v1381
        %v1400 = vunpack.c.l.b16 %v1382
        %v1401 = vpack.c.b16 %v1398, %v1397
        %v1402 = vpack.c.b16 %v1400, %v1399
        %v1406 = vsel %vm587, %v1392, 0
        %1408 = vmatprep.subr.bf16.mxu0 0
        %1409 = vmatpush1.bf16.msra.mxu0 %v1401
        %1410 = vmatprep.subr.bf16.mxu0 0
        %1411 = vmatpush1.bf16.msra.mxu0 %v1402
        %1412 = vmatprep.subr.bf16.mxu0 0
        %1413 = vmatpush1.bf16.msra.mxu0 0
        %1414 = vmatprep.subr.bf16.mxu0 0
        %1415 = vmatpush1.bf16.msra.mxu0 0
        %1416 = vmatprep.subr.bf16.mxu0 0
        %1417 = vmatpush1.bf16.msra.mxu0 0
        %1418 = vmatprep.subr.bf16.mxu0 0
        %1419 = vmatpush1.bf16.msra.mxu0 0
        %1420 = vmatprep.subr.bf16.mxu0 0
        %1421 = vmatpush1.bf16.msra.mxu0 0
        %1422 = vmatprep.subr.bf16.mxu0 0
        %1423 = vmatpush1.bf16.msra.mxu0 0
        %1424 = vmatprep.subr.bf16.mxu0 0
        %1425 = vmatpush1.bf16.msra.mxu0 0
        %1426 = vmatprep.subr.bf16.mxu0 0
        %1427 = vmatpush1.bf16.msra.mxu0 0
        %1428 = vmatprep.subr.bf16.mxu0 0
        %1429 = vmatpush1.bf16.msra.mxu0 0
        %1430 = vmatprep.subr.bf16.mxu0 0
        %1431 = vmatpush1.bf16.msra.mxu0 0
        %1432 = vmatprep.subr.bf16.mxu0 0
        %1433 = vmatpush1.bf16.msra.mxu0 0
        %1434 = vmatprep.subr.bf16.mxu0 0
        %1435 = vmatpush1.bf16.msra.mxu0 0
        %1436 = vmatprep.subr.bf16.mxu0 0
        %1437 = vmatpush1.bf16.msra.mxu0 0
        %1438 = vmatprep.subr.bf16.mxu0 0
        %1439 = vmatpush1.bf16.msra.mxu0 0
        %1440 = vmatprep.mubr.bf16.mxu0 0
        %1441 = vmatmul.mubr.bf16.gmra.mrb[0].mxu0 %v1406
        %v1442 = vpop.f32.mrb[0].mxu0
        %v1443 = vadd.f32 %v1388, %v1442
        %v1444 = vpop.f32.mrb[0].mxu0
        %v1445 = vpop.f32.mrb[0].mxu0
        %v1446 = vpop.f32.mrb[0].mxu0
        %1447 = vdwg.mxu0
        %v1448 = vld [vmem:[#allocation3] sm:$0xff]
        %v1449 = vld [vmem:[#allocation3 + $0x8] sm:$0xff]
        %v1450 = vld [vmem:[#allocation3 + $0x10] sm:$0xff]
        %v1451 = vld [vmem:[#allocation3 + $0x18] sm:$0xff]
        %v1452 = vld [vmem:[#allocation3 + $0x20] sm:$0xff]
        %v1453 = vld [vmem:[#allocation3 + $0x28] sm:$0xff]
        %v1454 = vld [vmem:[#allocation3 + $0x30] sm:$0xff]
        %v1455 = vld [vmem:[#allocation3 + $0x38] sm:$0xff]
        %v1456 = vpack.c.bf16 %v1449, %v1448
        %v1457 = vpack.c.bf16 %v1451, %v1450
        %v1458 = vpack.c.bf16 %v1453, %v1452
        %v1459 = vpack.c.bf16 %v1455, %v1454
        %v1460 = vld [vmem:[%s6] sm:$0xf]
        %v1461 = vld [vmem:[%s6 + $0x4] sm:$0xf]
        %v1462 = vld [vmem:[%s6 + $0x8] sm:$0xf]
        %v1463 = vld [vmem:[%s6 + $0xc] sm:$0xf]
        %v1468 = vunpack.c.l.b16 %v1460
        %v1469 = vunpack.c.l.b16 %v1461
        %v1470 = vunpack.c.l.b16 %v1462
        %v1471 = vunpack.c.l.b16 %v1463
        %v1472 = vpack.c.b16 %v1469, %v1468
        %v1473 = vpack.c.b16 %v1471, %v1470
        %v1477 = vsel %vm587, %v1456, 0
        %v1480 = vsel %vm587, %v1457, 0
        %v1483 = vsel %vm587, %v1458, 0
        %v1486 = vsel %vm587, %v1459, 0
        %1488 = vmatprep.subr.bf16.mxu0 0
        %1489 = vmatpush1.bf16.msra.mxu0 %v1472
        %1490 = vmatprep.subr.bf16.mxu0 0
        %1491 = vmatpush1.bf16.msra.mxu0 %v1473
        %1492 = vmatprep.subr.bf16.mxu0 0
        %1493 = vmatpush1.bf16.msra.mxu0 0
        %1494 = vmatprep.subr.bf16.mxu0 0
        %1495 = vmatpush1.bf16.msra.mxu0 0
        %1496 = vmatprep.subr.bf16.mxu0 0
        %1497 = vmatpush1.bf16.msra.mxu0 0
        %1498 = vmatprep.subr.bf16.mxu0 0
        %1499 = vmatpush1.bf16.msra.mxu0 0
        %1500 = vmatprep.subr.bf16.mxu0 0
        %1501 = vmatpush1.bf16.msra.mxu0 0
        %1502 = vmatprep.subr.bf16.mxu0 0
        %1503 = vmatpush1.bf16.msra.mxu0 0
        %1504 = vmatprep.subr.bf16.mxu0 0
        %1505 = vmatpush1.bf16.msra.mxu0 0
        %1506 = vmatprep.subr.bf16.mxu0 0
        %1507 = vmatpush1.bf16.msra.mxu0 0
        %1508 = vmatprep.subr.bf16.mxu0 0
        %1509 = vmatpush1.bf16.msra.mxu0 0
        %1510 = vmatprep.subr.bf16.mxu0 0
        %1511 = vmatpush1.bf16.msra.mxu0 0
        %1512 = vmatprep.subr.bf16.mxu0 0
        %1513 = vmatpush1.bf16.msra.mxu0 0
        %1514 = vmatprep.subr.bf16.mxu0 0
        %1515 = vmatpush1.bf16.msra.mxu0 0
        %1516 = vmatprep.subr.bf16.mxu0 0
        %1517 = vmatpush1.bf16.msra.mxu0 0
        %1518 = vmatprep.subr.bf16.mxu0 0
        %1519 = vmatpush1.bf16.msra.mxu0 0
        %1520 = vmatprep.mubr.bf16.mxu0 0
        %1521 = vmatmul.mubr.bf16.gmra.mrb[0].mxu0 %v1477
        %v1522 = vpop.f32.mrb[0].mxu0
        %v1523 = vadd.f32 0.0, %v1522
        %v1524 = vpop.f32.mrb[0].mxu0
        %v1525 = vpop.f32.mrb[0].mxu0
        %v1526 = vadd.f32 0.0, %v1525
        %v1527 = vpop.f32.mrb[0].mxu0
        %1528 = vmatprep.mubr.bf16.mxu0 0
        %1529 = vmatmul.mubr.bf16.gmra.mrb[0].mxu0 %v1480
        %v1530 = vpop.f32.mrb[0].mxu0
        %v1531 = vadd.f32 0.0, %v1530
        %v1532 = vpop.f32.mrb[0].mxu0
        %v1533 = vpop.f32.mrb[0].mxu0
        %v1534 = vadd.f32 0.0, %v1533
        %v1535 = vpop.f32.mrb[0].mxu0
        %1536 = vmatprep.mubr.bf16.mxu0 0
        %1537 = vmatmul.mubr.bf16.gmra.mrb[0].mxu0 %v1483
        %v1538 = vpop.f32.mrb[0].mxu0
        %v1539 = vadd.f32 0.0, %v1538
        %v1540 = vpop.f32.mrb[0].mxu0
        %v1541 = vpop.f32.mrb[0].mxu0
        %v1542 = vadd.f32 0.0, %v1541
        %v1543 = vpop.f32.mrb[0].mxu0
        %1544 = vmatprep.mubr.bf16.mxu0 0
        %1545 = vmatmul.mubr.bf16.gmra.mrb[0].mxu0 %v1486
        %v1546 = vpop.f32.mrb[0].mxu0
        %v1547 = vadd.f32 0.0, %v1546
        %v1548 = vpop.f32.mrb[0].mxu0
        %v1549 = vpop.f32.mrb[0].mxu0
        %v1550 = vadd.f32 0.0, %v1549
        %v1551 = vpop.f32.mrb[0].mxu0
        %1552 = vdwg.mxu0
        %1553 = vst.msk [vmem:[#allocation4] sm:$0xff] %vm587, %v1523
        %1554 = vst.msk [vmem:[#allocation4 + $0x8] sm:$0xff] %vm587, %v1526
        %1555 = vst.msk [vmem:[#allocation4 + $0x10] sm:$0xff] %vm587, %v1531
        %1556 = vst.msk [vmem:[#allocation4 + $0x18] sm:$0xff] %vm587, %v1534
        %1557 = vst.msk [vmem:[#allocation4 + $0x20] sm:$0xff] %vm587, %v1539
        %1558 = vst.msk [vmem:[#allocation4 + $0x28] sm:$0xff] %vm587, %v1542
        %1559 = vst.msk [vmem:[#allocation4 + $0x30] sm:$0xff] %vm587, %v1547
        %1560 = vst.msk [vmem:[#allocation4 + $0x38] sm:$0xff] %vm587, %v1550
        %v1561 = vld [vmem:[%s9] sm:$0x1]
        %v1562 = vld [vmem:[#allocation4] sm:$0xff]
        %v1563 = vadd.f32 %v1562, %v1443
        %v1564 = vtanh.pop %v1563
        %v1566 = vlaneseq
        %v1567 = vshrl.u32 %v1566, 7
        %v1568 = vsub.s32 0, %v1567
        %v1569 = vrot.slane %v1561, %v1568
        %v1571 = vmul.f32 %v1564, %v1569
        %v1572 = vsel %vm587, %v1571, 0.0
        %1573 = vadd.xlane.f32.xlu0 %v1572
        %v1574 = vpop.xlane.xlu0 %1573
        %v1575 = vld [vmem:[%s434] sm:$0xff]
        %vm1576 = vcmp.gt.f32.partialorder %v1575, 0.5
        %v1577 = vsel %vm1576, -1e+30, %v1574
        %v1578 = vmax.f32 %v1577, -1e+30
        %v1579 = vsub.f32 -1e+30, %v1578
        %v1580 = vmul.f32 %v1579, 1.442695
        %v1581 = vpow.pop %v1580
        %v1582 = vsub.f32 %v1577, %v1578
        %v1583 = vmul.f32 %v1582, 1.442695
        %v1584 = vpow.pop %v1583
        %v1585 = vld [vmem:[#allocation3] sm:$0xff]
        %v1586 = vmul.f32 %v1581, 0.0
        %v1587 = vadd.f32 %v1586, %v1584
        %1589 = vset.pattern.permute.xlu0 0
        %1590 = vperm.xlu0 %1589, %v1581
        %v1591 = vpop.permute.xlu0 %1590
        %v1593 = vmul.f32 %v1591, 0.0
        %1595 = vset.pattern.permute.xlu0 0
        %1596 = vperm.xlu0 %1595, %v1584
        %v1597 = vpop.permute.xlu0 %1596
        %v1599 = vmul.f32 %v1597, %v1585
        %v1600 = vadd.f32 %v1593, %v1599
        %s1601 = scalar_lea.vmem [#allocation4], 8
        %v1602 = vld [vmem:[%s1601] sm:$0xff]
        %v1603 = vadd.f32 %v1602, %v1443
        %v1604 = vtanh.pop %v1603
        %v1605 = vmul.f32 %v1604, %v1569
        %v1606 = vsel %vm587, %v1605, 0.0
        %1607 = vadd.xlane.f32.xlu0 %v1606
        %v1608 = vpop.xlane.xlu0 %1607
        %v1609 = vld [vmem:[%s687] sm:$0xff]
        %vm1610 = vcmp.gt.f32.partialorder %v1609, 0.5
        %v1611 = vsel %vm1610, -1e+30, %v1608
        %v1612 = vmax.f32 %v1578, %v1611
        %v1613 = vsub.f32 %v1578, %v1612
        %v1614 = vmul.f32 %v1613, 1.442695
        %v1615 = vpow.pop %v1614
        %v1616 = vsub.f32 %v1611, %v1612
        %v1617 = vmul.f32 %v1616, 1.442695
        %v1618 = vpow.pop %v1617
        %v1619 = vld [vmem:[%s774] sm:$0xff]
        %v1620 = vmul.f32 %v1615, %v1587
        %v1621 = vadd.f32 %v1620, %v1618
        %1623 = vset.pattern.permute.xlu0 0
        %1624 = vperm.xlu0 %1623, %v1615
        %v1625 = vpop.permute.xlu0 %1624
        %v1627 = vmul.f32 %v1625, %v1600
        %1629 = vset.pattern.permute.xlu0 0
        %1630 = vperm.xlu0 %1629, %v1618
        %v1631 = vpop.permute.xlu0 %1630
        %v1633 = vmul.f32 %v1631, %v1619
        %v1634 = vadd.f32 %v1627, %v1633
        %s1635 = scalar_lea.vmem [#allocation4], 16
        %v1636 = vld [vmem:[%s1635] sm:$0xff]
        %v1637 = vadd.f32 %v1636, %v1443
        %v1638 = vtanh.pop %v1637
        %v1639 = vmul.f32 %v1638, %v1569
        %v1640 = vsel %vm587, %v1639, 0.0
        %1641 = vadd.xlane.f32.xlu0 %v1640
        %v1642 = vpop.xlane.xlu0 %1641
        %v1643 = vld [vmem:[%s786] sm:$0xff]
        %vm1644 = vcmp.gt.f32.partialorder %v1643, 0.5
        %v1645 = vsel %vm1644, -1e+30, %v1642
        %v1646 = vmax.f32 %v1612, %v1645
        %v1647 = vsub.f32 %v1612, %v1646
        %v1648 = vmul.f32 %v1647, 1.442695
        %v1649 = vpow.pop %v1648
        %v1650 = vsub.f32 %v1645, %v1646
        %v1651 = vmul.f32 %v1650, 1.442695
        %v1652 = vpow.pop %v1651
        %v1653 = vld [vmem:[%s873] sm:$0xff]
        %v1654 = vmul.f32 %v1649, %v1621
        %v1655 = vadd.f32 %v1654, %v1652
        %1657 = vset.pattern.permute.xlu0 0
        %1658 = vperm.xlu0 %1657, %v1649
        %v1659 = vpop.permute.xlu0 %1658
        %v1661 = vmul.f32 %v1659, %v1634
        %1663 = vset.pattern.permute.xlu0 0
        %1664 = vperm.xlu0 %1663, %v1652
        %v1665 = vpop.permute.xlu0 %1664
        %v1667 = vmul.f32 %v1665, %v1653
        %v1668 = vadd.f32 %v1661, %v1667
        %s1669 = scalar_lea.vmem [#allocation4], 24
        %v1670 = vld [vmem:[%s1669] sm:$0xff]
        %v1671 = vadd.f32 %v1670, %v1443
        %v1672 = vtanh.pop %v1671
        %v1673 = vmul.f32 %v1672, %v1569
        %v1674 = vsel %vm587, %v1673, 0.0
        %1675 = vadd.xlane.f32.xlu0 %v1674
        %v1676 = vpop.xlane.xlu0 %1675
        %v1677 = vld [vmem:[%s885] sm:$0xff]
        %vm1678 = vcmp.gt.f32.partialorder %v1677, 0.5
        %v1679 = vsel %vm1678, -1e+30, %v1676
        %v1680 = vmax.f32 %v1646, %v1679
        %v1681 = vsub.f32 %v1646, %v1680
        %v1682 = vmul.f32 %v1681, 1.442695
        %v1683 = vpow.pop %v1682
        %v1684 = vsub.f32 %v1679, %v1680
        %v1685 = vmul.f32 %v1684, 1.442695
        %v1686 = vpow.pop %v1685
        %v1687 = vld [vmem:[%s972] sm:$0xff]
        %v1688 = vmul.f32 %v1683, %v1655
        %v1689 = vadd.f32 %v1688, %v1686
        %1691 = vset.pattern.permute.xlu0 0
        %1692 = vperm.xlu0 %1691, %v1683
        %v1693 = vpop.permute.xlu0 %1692
        %v1695 = vmul.f32 %v1693, %v1668
        %1697 = vset.pattern.permute.xlu0 0
        %1698 = vperm.xlu0 %1697, %v1686
        %v1699 = vpop.permute.xlu0 %1698
        %v1701 = vmul.f32 %v1699, %v1687
        %v1702 = vadd.f32 %v1695, %v1701
        %s1703 = scalar_lea.vmem [#allocation4], 32
        %v1704 = vld [vmem:[%s1703] sm:$0xff]
        %v1705 = vadd.f32 %v1704, %v1443
        %v1706 = vtanh.pop %v1705
        %v1707 = vmul.f32 %v1706, %v1569
        %v1708 = vsel %vm587, %v1707, 0.0
        %1709 = vadd.xlane.f32.xlu0 %v1708
        %v1710 = vpop.xlane.xlu0 %1709
        %v1711 = vld [vmem:[%s984] sm:$0xff]
        %vm1712 = vcmp.gt.f32.partialorder %v1711, 0.5
        %v1713 = vsel %vm1712, -1e+30, %v1710
        %v1714 = vmax.f32 %v1680, %v1713
        %v1715 = vsub.f32 %v1680, %v1714
        %v1716 = vmul.f32 %v1715, 1.442695
        %v1717 = vpow.pop %v1716
        %v1718 = vsub.f32 %v1713, %v1714
        %v1719 = vmul.f32 %v1718, 1.442695
        %v1720 = vpow.pop %v1719
        %v1721 = vld [vmem:[%s1071] sm:$0xff]
        %v1722 = vmul.f32 %v1717, %v1689
        %v1723 = vadd.f32 %v1722, %v1720
        %1725 = vset.pattern.permute.xlu0 0
        %1726 = vperm.xlu0 %1725, %v1717
        %v1727 = vpop.permute.xlu0 %1726
        %v1729 = vmul.f32 %v1727, %v1702
        %1731 = vset.pattern.permute.xlu0 0
        %1732 = vperm.xlu0 %1731, %v1720
        %v1733 = vpop.permute.xlu0 %1732
        %v1735 = vmul.f32 %v1733, %v1721
        %v1736 = vadd.f32 %v1729, %v1735
        %s1737 = scalar_lea.vmem [#allocation4], 40
        %v1738 = vld [vmem:[%s1737] sm:$0xff]
        %v1739 = vadd.f32 %v1738, %v1443
        %v1740 = vtanh.pop %v1739
        %v1741 = vmul.f32 %v1740, %v1569
        %v1742 = vsel %vm587, %v1741, 0.0
        %1743 = vadd.xlane.f32.xlu0 %v1742
        %v1744 = vpop.xlane.xlu0 %1743
        %v1745 = vld [vmem:[%s1083] sm:$0xff]
        %vm1746 = vcmp.gt.f32.partialorder %v1745, 0.5
        %v1747 = vsel %vm1746, -1e+30, %v1744
        %v1748 = vmax.f32 %v1714, %v1747
        %v1749 = vsub.f32 %v1714, %v1748
        %v1750 = vmul.f32 %v1749, 1.442695
        %v1751 = vpow.pop %v1750
        %v1752 = vsub.f32 %v1747, %v1748
        %v1753 = vmul.f32 %v1752, 1.442695
        %v1754 = vpow.pop %v1753
        %v1755 = vld [vmem:[%s1170] sm:$0xff]
        %v1756 = vmul.f32 %v1751, %v1723
        %v1757 = vadd.f32 %v1756, %v1754
        %1759 = vset.pattern.permute.xlu0 0
        %1760 = vperm.xlu0 %1759, %v1751
        %v1761 = vpop.permute.xlu0 %1760
        %v1763 = vmul.f32 %v1761, %v1736
        %1765 = vset.pattern.permute.xlu0 0
        %1766 = vperm.xlu0 %1765, %v1754
        %v1767 = vpop.permute.xlu0 %1766
        %v1769 = vmul.f32 %v1767, %v1755
        %v1770 = vadd.f32 %v1763, %v1769
        %s1771 = scalar_lea.vmem [#allocation4], 48
        %v1772 = vld [vmem:[%s1771] sm:$0xff]
        %v1773 = vadd.f32 %v1772, %v1443
        %v1774 = vtanh.pop %v1773
        %v1775 = vmul.f32 %v1774, %v1569
        %v1776 = vsel %vm587, %v1775, 0.0
        %1777 = vadd.xlane.f32.xlu0 %v1776
        %v1778 = vpop.xlane.xlu0 %1777
        %v1779 = vld [vmem:[%s1182] sm:$0xff]
        %vm1780 = vcmp.gt.f32.partialorder %v1779, 0.5
        %v1781 = vsel %vm1780, -1e+30, %v1778
        %v1782 = vmax.f32 %v1748, %v1781
        %v1783 = vsub.f32 %v1748, %v1782
        %v1784 = vmul.f32 %v1783, 1.442695
        %v1785 = vpow.pop %v1784
        %v1786 = vsub.f32 %v1781, %v1782
        %v1787 = vmul.f32 %v1786, 1.442695
        %v1788 = vpow.pop %v1787
        %v1789 = vld [vmem:[%s1269] sm:$0xff]
        %v1790 = vmul.f32 %v1785, %v1757
        %v1791 = vadd.f32 %v1790, %v1788
        %1793 = vset.pattern.permute.xlu0 0
        %1794 = vperm.xlu0 %1793, %v1785
        %v1795 = vpop.permute.xlu0 %1794
        %v1797 = vmul.f32 %v1795, %v1770
        %1799 = vset.pattern.permute.xlu0 0
        %1800 = vperm.xlu0 %1799, %v1788
        %v1801 = vpop.permute.xlu0 %1800
        %v1803 = vmul.f32 %v1801, %v1789
        %v1804 = vadd.f32 %v1797, %v1803
        %s1805 = scalar_lea.vmem [#allocation4], 56
        %v1806 = vld [vmem:[%s1805] sm:$0xff]
        %v1807 = vadd.f32 %v1806, %v1443
        %v1808 = vtanh.pop %v1807
        %v1809 = vmul.f32 %v1808, %v1569
        %v1810 = vsel %vm587, %v1809, 0.0
        %1811 = vadd.xlane.f32.xlu0 %v1810
        %v1812 = vpop.xlane.xlu0 %1811
        %v1813 = vld [vmem:[%s1281] sm:$0xff]
        %vm1814 = vcmp.gt.f32.partialorder %v1813, 0.5
        %v1815 = vsel %vm1814, -1e+30, %v1812
        %v1816 = vmax.f32 %v1782, %v1815
        %v1817 = vsub.f32 %v1782, %v1816
        %v1818 = vmul.f32 %v1817, 1.442695
        %v1819 = vpow.pop %v1818
        %v1820 = vsub.f32 %v1815, %v1816
        %v1821 = vmul.f32 %v1820, 1.442695
        %v1822 = vpow.pop %v1821
        %v1823 = vld [vmem:[%s1368] sm:$0xff]
        %v1824 = vmul.f32 %v1819, %v1791
        %v1825 = vadd.f32 %v1824, %v1822
        %1827 = vset.pattern.permute.xlu0 0
        %1828 = vperm.xlu0 %1827, %v1819
        %v1829 = vpop.permute.xlu0 %1828
        %v1831 = vmul.f32 %v1829, %v1804
        %1833 = vset.pattern.permute.xlu0 0
        %1834 = vperm.xlu0 %1833, %v1822
        %v1835 = vpop.permute.xlu0 %1834
        %v1837 = vmul.f32 %v1835, %v1823
        %v1838 = vadd.f32 %v1831, %v1837
        %v1839 = vmax.f32 %v1825, 1e-30
        %v1840 = vrcp.pop %v1839
        %1842 = vset.pattern.permute.xlu0 0
        %1843 = vperm.xlu0 %1842, %v1840
        %v1844 = vpop.permute.xlu0 %1843
        %v1846 = vmul.f32 %v1838, %v1844
        %v1847 = vpack.c.bf16 %v1846, %v1846
        %v1848 = vld [vmem:[%s10] sm:$0xf]
        %v1849 = vld [vmem:[%s10 + $0x4] sm:$0xf]
        %v1850 = vld [vmem:[%s10 + $0x8] sm:$0xf]
        %v1851 = vld [vmem:[%s10 + $0xc] sm:$0xf]
        %v1852 = vld [vmem:[%s11] sm:$0x1]
        %v1854 = vlaneseq
        %v1855 = vshrl.u32 %v1854, 7
        %v1856 = vsub.s32 0, %v1855
        %v1857 = vrot.slane %v1852, %v1856
        %v1863 = vunpack.c.l.b16 %v1848
        %v1864 = vunpack.c.l.b16 %v1849
        %v1865 = vunpack.c.l.b16 %v1850
        %v1866 = vunpack.c.l.b16 %v1851
        %v1867 = vpack.c.b16 %v1864, %v1863
        %v1868 = vpack.c.b16 %v1866, %v1865
        %v1872 = vsel %vm587, %v1847, 0
        %1874 = vmatprep.subr.bf16.mxu0 0
        %1875 = vmatpush1.bf16.msra.mxu0 %v1867
        %1876 = vmatprep.subr.bf16.mxu0 0
        %1877 = vmatpush1.bf16.msra.mxu0 %v1868
        %1878 = vmatprep.subr.bf16.mxu0 0
        %1879 = vmatpush1.bf16.msra.mxu0 0
        %1880 = vmatprep.subr.bf16.mxu0 0
        %1881 = vmatpush1.bf16.msra.mxu0 0
        %1882 = vmatprep.subr.bf16.mxu0 0
        %1883 = vmatpush1.bf16.msra.mxu0 0
        %1884 = vmatprep.subr.bf16.mxu0 0
        %1885 = vmatpush1.bf16.msra.mxu0 0
        %1886 = vmatprep.subr.bf16.mxu0 0
        %1887 = vmatpush1.bf16.msra.mxu0 0
        %1888 = vmatprep.subr.bf16.mxu0 0
        %1889 = vmatpush1.bf16.msra.mxu0 0
        %1890 = vmatprep.subr.bf16.mxu0 0
        %1891 = vmatpush1.bf16.msra.mxu0 0
        %1892 = vmatprep.subr.bf16.mxu0 0
        %1893 = vmatpush1.bf16.msra.mxu0 0
        %1894 = vmatprep.subr.bf16.mxu0 0
        %1895 = vmatpush1.bf16.msra.mxu0 0
        %1896 = vmatprep.subr.bf16.mxu0 0
        %1897 = vmatpush1.bf16.msra.mxu0 0
        %1898 = vmatprep.subr.bf16.mxu0 0
        %1899 = vmatpush1.bf16.msra.mxu0 0
        %1900 = vmatprep.subr.bf16.mxu0 0
        %1901 = vmatpush1.bf16.msra.mxu0 0
        %1902 = vmatprep.subr.bf16.mxu0 0
        %1903 = vmatpush1.bf16.msra.mxu0 0
        %1904 = vmatprep.subr.bf16.mxu0 0
        %1905 = vmatpush1.bf16.msra.mxu0 0
        %1906 = vmatprep.mubr.bf16.mxu0 0
        %1907 = vmatmul.mubr.bf16.gmra.mrb[0].mxu0 %v1872
        %v1908 = vpop.f32.mrb[0].mxu0
        %v1909 = vadd.f32 %v1857, %v1908
        %v1910 = vpop.f32.mrb[0].mxu0
        %v1911 = vpop.f32.mrb[0].mxu0
        %v1912 = vpop.f32.mrb[0].mxu0
        %1913 = vdwg.mxu0
        %1914 = vst [vmem:[%s423] sm:$0xff] %v1909
        %s1915 = sand.u32 %s296, 1
        %s1916 = scalar_lea.sflag [#allocation6], %s1915
        %s1917 = sand.u32 %s296, 1
        %s1918 = smul.addr %s1917, 8
        %s1919 = scalar_lea.vmem [#allocation5], %s1918
        // Predicated region
        $region69: #{tpu_custom_call.1} parent=67 // pred_check
          %p1920 = pneg %p306
        $region70: #{tpu_custom_call.1} parent=67 // pred_check_branch
          %1922 = sbr.rel (%p1920) target = $region72
        $region71: #{tpu_custom_call.1} parent=67 // pred_region
          %s1924 = ssub.s32 128, 128
          %1925 = vsyncadd %s1916, %s1924
          %s1926 = smul.addr %s26, 128
          %s1927 = scalar_lea.hbm %s12, %s1926
          %s1929 = sshll.u32 %s1919, 4
          %s1930 = int_to_ptr.vmem [resolvable:$true] %s1929
          %1932 = dma.vmem_to_hbm [thread:$0]  %s1930, 128, %s1927, %s1916
        $region72: #{tpu_custom_call.1} parent=67 // pred_fallthru
          _
      $region68: #{tpu_custom_call.1} parent=5 // pred_fallthru
        _
      %p1933 = scmp.le.s32.totalorder 2, %s21
      // Predicated region
      $region73: #{tpu_custom_call.1} parent=5 // pred_check
        %p1934 = pneg %p1933
      $region74: #{tpu_custom_call.1} parent=5 // pred_check_branch
        %1936 = sbr.rel (%p1934) target = $region76
      $region75: #{tpu_custom_call.1} parent=5 // pred_region
        %s1937 = ssub.s32 %s21, 2
        // Predicated region
        $region77: #{tpu_custom_call.1} parent=75 // pred_check
          %p1938 = pneg %p312
        $region78: #{tpu_custom_call.1} parent=75 // pred_check_branch
          %1940 = sbr.rel (%p1938) target = $region80
        $region79: #{tpu_custom_call.1} parent=75 // pred_region
          %s1941 = sand.u32 %s297, 1
          %s1942 = scalar_lea.sflag [#allocation6], %s1941
          %s1943 = sand.u32 %s297, 1
          %s1944 = smul.addr %s1943, 8
          %s1945 = scalar_lea.vmem [#allocation5], %s1944
          %1946 = dma.done %s1942, 128
        $region80: #{tpu_custom_call.1} parent=75 // pred_fallthru
          _
      $region76: #{tpu_custom_call.1} parent=5 // pred_fallthru
        _
    $region6: #{tpu_custom_call.1} parent=1 // loop_footer
      %s25 = sadd.s32 1, %s21
    $region7: #{tpu_custom_call.1} parent=1 // loop_footer_branch
      %20 = sbr.rel target = $region3
    $region8: #{tpu_custom_call.1} parent=1 // loop_exit
      _
    %1947 = vsyncpa [#allocation6], 1
    %s1948 = scalar_lea.sflag [#allocation6], 1
    %1949 = vsyncpa %s1948, 1

</llo_original>
